<compile_context>
chip_gen: v5e
topology: v5e:2x2
jax: 0.10.0
libtpu: 0.0.40
codegen_flags: <defaults>
</compile_context>

<pallas_src>
import functools

import jax
import jax.numpy as jnp
from jax.experimental import pallas as pl
from jax.experimental.pallas import tpu as pltpu

EPS = 1e-5          # nn.BatchNorm2d default eps
TM = 256            # row-tile (M = N*Ho*Wo)
TK_CAP = 512        # max K tile (multiple of 128)
VMEM_LIMIT = 32 * 1024 * 1024


def _round_up(x, m):
    return (x + m - 1) // m * m


def _pad_to(a, shape):
    return jnp.pad(a, [(0, s - d) for d, s in zip(a.shape, shape)])


# ----------------------------------------------------------------------------
# Pallas kernels
# ----------------------------------------------------------------------------
def _gemm_stats_kernel(p_ref, w_ref, o_ref, stats_ref, acc_ref):
    """Tiled GEMM (bf16 x bf16 -> f32) + per-tile BN partial sums.

    grid = (M tiles [parallel], K tiles [arbitrary]).
    """
    k = pl.program_id(1)

    @pl.when(k == 0)
    def _():
        acc_ref[...] = jnp.zeros_like(acc_ref)

    acc_ref[...] += jnp.dot(p_ref[...], w_ref[...],
                            preferred_element_type=jnp.float32)

    @pl.when(k == pl.num_programs(1) - 1)
    def _():
        acc = acc_ref[...]
        o_ref[...] = acc.astype(o_ref.dtype)
        s0 = jnp.sum(acc, axis=0, keepdims=True)            # (1, Cp)
        s1 = jnp.sum(acc * acc, axis=0, keepdims=True)       # (1, Cp)
        stats_ref[...] = jnp.concatenate([s0, s1], axis=0)[None, :, :]


def _bn_relu_kernel(y_ref, sc_ref, sh_ref, o_ref):
    """out = relu(y * scale + shift)   (BN applied with precomputed stats)."""
    o_ref[...] = jnp.maximum(
        y_ref[...] * sc_ref[...] + sh_ref[...], 0.0).astype(o_ref.dtype)


def _bn_add_relu_kernel(y_ref, sc_ref, sh_ref, r_ref, o_ref):
    """out = relu(bn2(y) + residual)   (identity shortcut)."""
    o_ref[...] = jnp.maximum(
        y_ref[...] * sc_ref[...] + sh_ref[...] + r_ref[...], 0.0
    ).astype(o_ref.dtype)


def _bn2_add_bn_relu_kernel(y_ref, sc_ref, sh_ref, ys_ref, ss_ref, hs_ref, o_ref):
    """out = relu(bn2(y) + bn_sc(y_sc))   (projection shortcut)."""
    main = y_ref[...] * sc_ref[...] + sh_ref[...]
    res = ys_ref[...] * ss_ref[...] + hs_ref[...]
    o_ref[...] = jnp.maximum(main + res, 0.0).astype(o_ref.dtype)


# ----------------------------------------------------------------------------
# pallas_call wrappers
# ----------------------------------------------------------------------------
def _conv_gemm_bn_stats(patches, weight, gamma, beta, m_true, *, tm=TM):
    """conv-as-GEMM with fused BN-statistics accumulation.

    patches: (M, K) (any float dtype; cast to bf16), weight: (K, Cout) f32.
    Returns y (Mp, Cp) f32, scale (1, Cp) f32, shift (1, Cp) f32.
    """
    m, k = patches.shape
    _, cout = weight.shape
    cp = _round_up(cout, 128)
    kp = _round_up(k, 128)
    tk = kp if kp <= TK_CAP else TK_CAP
    kp = _round_up(kp, tk)
    mp = _round_up(m, tm)
    nm, nk = mp // tm, kp // tk

    p = _pad_to(patches.astype(jnp.bfloat16), (mp, kp))
    w = _pad_to(weight, (kp, cp)).astype(jnp.bfloat16)

    cost = pl.CostEstimate(
        flops=2 * mp * kp * cp,
        transcendentals=0,
        bytes_accessed=mp * kp * 2 + kp * cp * 2 + mp * cp * 4 + nm * 2 * cp * 4)

    y, stats = pl.pallas_call(
        _gemm_stats_kernel,
        out_shape=(jax.ShapeDtypeStruct((mp, cp), jnp.float32),
                   jax.ShapeDtypeStruct((nm, 2, cp), jnp.float32)),
        grid=(nm, nk),
        in_specs=[pl.BlockSpec((tm, tk), lambda i, kk: (i, kk)),
                  pl.BlockSpec((tk, cp), lambda i, kk: (kk, 0))],
        out_specs=(pl.BlockSpec((tm, cp), lambda i, kk: (i, 0)),
                   pl.BlockSpec((1, 2, cp), lambda i, kk: (i, 0, 0))),
        scratch_shapes=[pltpu.VMEM((tm, cp), jnp.float32)],
        compiler_params=pltpu.CompilerParams(
            dimension_semantics=("parallel", "arbitrary"),
            vmem_limit_bytes=VMEM_LIMIT),
        cost_estimate=cost,
    )(p, w)

    # Cross-tile BN reduction (tiny per-channel math; f32 throughout).
    sums = jnp.sum(stats, axis=0)                        # (2, Cp)
    mean = sums[0] / m_true
    var = jnp.maximum(sums[1] / m_true - mean * mean, 0.0)   # biased, as PyTorch
    g = _pad_to(gamma.reshape(1, -1).astype(jnp.float32), (1, cp))
    b = _pad_to(beta.reshape(1, -1).astype(jnp.float32), (1, cp))
    scale = g * jax.lax.rsqrt(var + EPS)[None, :]
    shift = b - mean[None, :] * scale
    return y, scale, shift


def _apply_rows(kernel, out_dtype, *args, tm=TM):
    """Tiled elementwise pass over (Mp, Cp) tensors; (1, Cp) args broadcast."""
    mp, cp = args[0].shape
    nm = mp // tm

    def spec(a):
        if a.shape[0] == 1:                       # lane-dense per-channel row
            return pl.BlockSpec((1, cp), lambda i: (0, 0))
        return pl.BlockSpec((tm, cp), lambda i: (i, 0))

    return pl.pallas_call(
        kernel,
        out_shape=jax.ShapeDtypeStruct((mp, cp), out_dtype),
        grid=(nm,),
        in_specs=[spec(a) for a in args],
        out_specs=pl.BlockSpec((tm, cp), lambda i: (i, 0)),
        compiler_params=pltpu.CompilerParams(
            dimension_semantics=("parallel",),
            vmem_limit_bytes=VMEM_LIMIT),
    )(*args)


# ----------------------------------------------------------------------------
# JAX-side glue: im2col and parameter handling
# ----------------------------------------------------------------------------
def _im2col(x_nhwc, k, stride, pad):
    """x: (N,H,W,C) -> patches (N*Ho*Wo, k*k*C) in (dy, dx, ci) order."""
    x = jnp.pad(x_nhwc, ((0, 0), (pad, pad), (pad, pad), (0, 0)))
    n, hp, wp, c = x.shape
    ho = (hp - k) // stride + 1
    wo = (wp - k) // stride + 1
    cols = [x[:, dy:dy + stride * ho:stride, dx:dx + stride * wo:stride, :]
            for dy in range(k) for dx in range(k)]
    patches = jnp.concatenate(cols, axis=-1)          # (N, Ho, Wo, k*k*C)
    return patches.reshape(n * ho * wo, k * k * c), (ho, wo)


def _reshape_weight(w):
    """PyTorch conv weight (Cout, Cin, kh, kw) -> (kh*kw*Cin, Cout)."""
    cout, cin, kh, kw = w.shape
    return jnp.transpose(w, (2, 3, 1, 0)).reshape(kh * kw * cin, cout)


def make_residual_block_params(key, in_channels, out_channels, stride):
    k1, k2, k3 = jax.random.split(key, 3)
    params = {
        "w1": 0.1 * jax.random.normal(k1, (out_channels, in_channels, 3, 3), jnp.float32),
        "g1": jnp.ones((out_channels,), jnp.float32),
        "b1": jnp.zeros((out_channels,), jnp.float32),
        "w2": 0.1 * jax.random.normal(k2, (out_channels, out_channels, 3, 3), jnp.float32),
        "g2": jnp.ones((out_channels,), jnp.float32),
        "b2": jnp.zeros((out_channels,), jnp.float32),
    }
    if stride != 1 or in_channels != out_channels:
        params["wsc"] = 0.1 * jax.random.normal(
            k3, (out_channels, in_channels, 1, 1), jnp.float32)
        params["gsc"] = jnp.ones((out_channels,), jnp.float32)
        params["bsc"] = jnp.zeros((out_channels,), jnp.float32)
    return params


@functools.partial(jax.jit, static_argnames=("stride",))
def residual_block_forward(x_nchw, params, stride=1):
    """Forward pass matching ResidualBlock.forward (training-mode BatchNorm)."""
    x = jnp.transpose(x_nchw, (0, 2, 3, 1)).astype(jnp.float32)   # NCHW -> NHWC
    n, h, w, cin = x.shape
    cout = params["w1"].shape[0]
    x_bf16 = x.astype(jnp.bfloat16)                                # MXU operands

    # --- conv1 (3x3, stride, pad=1) + bn1 stats -----------------------------
    p1, (ho, wo) = _im2col(x_bf16, 3, stride, 1)
    m = n * ho * wo
    y1, scale1, shift1 = _conv_gemm_bn_stats(
        p1, _reshape_weight(params["w1"]), params["g1"], params["b1"], m)

    # --- bn1 + relu (bf16 output: it only feeds conv2's MXU) ----------------
    h1 = _apply_rows(_bn_relu_kernel, jnp.bfloat16, y1, scale1, shift1)

    # --- conv2 (3x3, stride=1, pad=1) + bn2 stats ----------------------------
    h1_nhwc = h1[:m, :cout].reshape(n, ho, wo, cout)
    p2, _ = _im2col(h1_nhwc, 3, 1, 1)
    y2, scale2, shift2 = _conv_gemm_bn_stats(
        p2, _reshape_weight(params["w2"]), params["g2"], params["b2"], m)

    # --- shortcut + bn2-apply + add + relu -----------------------------------
    if stride != 1 or cin != cout:
        # 1x1 projection shortcut: strided reshape, no im2col needed.
        xs = x_bf16[:, ::stride, ::stride, :].reshape(m, cin)
        ysc, scale_sc, shift_sc = _conv_gemm_bn_stats(
            xs, _reshape_weight(params["wsc"]), params["gsc"], params["bsc"], m)
        out = _apply_rows(_bn2_add_bn_relu_kernel, jnp.float32,
                          y2, scale2, shift2, ysc, scale_sc, shift_sc)
    else:
        res = _pad_to(x.reshape(m, cin), y2.shape)        # identity, f32 add
        out = _apply_rows(_bn_add_relu_kernel, jnp.float32,
                          y2, scale2, shift2, res)

    out = out[:m, :cout].reshape(n, ho, wo, cout)
    # TODO(synk): when composing many blocks, stay NHWC and drop this transpose.
    return jnp.transpose(out, (0, 3, 1, 2))               # back to NCHW


# ----------------------------------------------------------------------------
# Demo
# ----------------------------------------------------------------------------
if __name__ == "__main__":
    key = jax.random.PRNGKey(0)
    kx1, kx2, kp1, kp2 = jax.random.split(key, 4)

    # Projection-shortcut config (cin != cout).
    x = jax.random.normal(kx1, (2, 4, 16, 16), jnp.float32)        # NCHW
    params = make_residual_block_params(kp1, 4, 8, 1)
    y = residual_block_forward(x, params, stride=1)
    jax.block_until_ready(y)
    assert y.shape == (2, 8, 16, 16)
    assert bool(jnp.all(y >= 0.0))                                  # final ReLU

    # Identity-shortcut config (cin == cout, stride == 1).
    x2 = jax.random.normal(kx2, (2, 8, 16, 16), jnp.float32)
    params2 = make_residual_block_params(kp2, 8, 8, 1)
    y2 = residual_block_forward(x2, params2, stride=1)
    jax.block_until_ready(y2)
    assert y2.shape == (2, 8, 16, 16)
    assert bool(jnp.all(y2 >= 0.0))

    print("KERNEL_OK")
</pallas_src>

<mosaic_0001>
module attributes {stable_mosaic.version = 11 : i64} {
  func.func @_bn_relu_kernel(%arg0: i32, %arg1: memref<256x128xf32, #tpu.memory_space<vmem>>, %arg2: memref<1x128xf32, #tpu.memory_space<vmem>>, %arg3: memref<1x128xf32, #tpu.memory_space<vmem>>, %arg4: memref<256x128xbf16, #tpu.memory_space<vmem>>) attributes {dimension_semantics = [#tpu.dimension_semantics<parallel>], iteration_bounds = array<i64: 2>, scalar_prefetch = 0 : i64, scratch_operands = 0 : i64, tpu.core_type = #tpu.core_type<tc>, window_params = [{transform_indices = @transform_0, window_bounds = array<i64: 256, 128>}, {pipeline_mode = #tpu.pipeline_mode<synchronous>, transform_indices = @transform_1, window_bounds = array<i64: 1, 128>}, {pipeline_mode = #tpu.pipeline_mode<synchronous>, transform_indices = @transform_2, window_bounds = array<i64: 1, 128>}, {transform_indices = @transform_3, window_bounds = array<i64: 256, 128>}]} {
    %c0 = arith.constant 0 : index
    %c0_0 = arith.constant 0 : index
    %0 = vector.load %arg1[%c0, %c0_0] : memref<256x128xf32, #tpu.memory_space<vmem>>, vector<256x128xf32>
    %c0_1 = arith.constant 0 : index
    %c0_2 = arith.constant 0 : index
    %1 = vector.load %arg2[%c0_1, %c0_2] : memref<1x128xf32, #tpu.memory_space<vmem>>, vector<1x128xf32>
    %2 = vector.broadcast %1 : vector<1x128xf32> to vector<256x128xf32>
    %3 = arith.mulf %0, %2 : vector<256x128xf32>
    %c0_3 = arith.constant 0 : index
    %c0_4 = arith.constant 0 : index
    %4 = vector.load %arg3[%c0_3, %c0_4] : memref<1x128xf32, #tpu.memory_space<vmem>>, vector<1x128xf32>
    %5 = vector.broadcast %4 : vector<1x128xf32> to vector<256x128xf32>
    %6 = arith.addf %3, %5 : vector<256x128xf32>
    %cst = arith.constant 0.000000e+00 : f32
    %7 = vector.broadcast %cst : f32 to vector<256x128xf32>
    %8 = arith.maximumf %6, %7 : vector<256x128xf32>
    %9 = arith.truncf %8 : vector<256x128xf32> to vector<256x128xbf16>
    %c0_5 = arith.constant 0 : index
    %c0_6 = arith.constant 0 : index
    %10 = vector.load %arg4[%c0_5, %c0_6] : memref<256x128xbf16, #tpu.memory_space<vmem>>, vector<256x128xbf16>
    tpu.vector_store %arg4[%c0_5, %c0_6], %9 {strides = array<i32>} : memref<256x128xbf16, #tpu.memory_space<vmem>>, vector<256x128xbf16>,
    return
  }
  func.func @transform_0(%arg0: i32) -> (i32, i32) {
    %c0_i32 = arith.constant 0 : i32
    %c0_i32_0 = arith.constant 0 : i32
    return %arg0, %c0_i32 : i32, i32
  }
  func.func @transform_1(%arg0: i32) -> (i32, i32) {
    %c0_i32 = arith.constant 0 : i32
    %c0_i32_0 = arith.constant 0 : i32
    %c0_i32_1 = arith.constant 0 : i32
    return %c0_i32, %c0_i32_0 : i32, i32
  }
  func.func @transform_2(%arg0: i32) -> (i32, i32) {
    %c0_i32 = arith.constant 0 : i32
    %c0_i32_0 = arith.constant 0 : i32
    %c0_i32_1 = arith.constant 0 : i32
    return %c0_i32, %c0_i32_0 : i32, i32
  }
  func.func @transform_3(%arg0: i32) -> (i32, i32) {
    %c0_i32 = arith.constant 0 : i32
    %c0_i32_0 = arith.constant 0 : i32
    return %arg0, %c0_i32 : i32, i32
  }
}

module attributes {stable_mosaic.version = 11 : i64} {
  func.func @_gemm_stats_kernel(%arg0: i32, %arg1: i32, %arg2: memref<256x128xbf16, #tpu.memory_space<vmem>>, %arg3: memref<128x128xbf16, #tpu.memory_space<vmem>>, %arg4: memref<256x128xf32, #tpu.memory_space<vmem>>, %arg5: memref<1x2x128xf32, #tpu.memory_space<vmem>>, %arg6: memref<256x128xf32, #tpu.memory_space<vmem>>) attributes {dimension_semantics = [#tpu.dimension_semantics<parallel>, #tpu.dimension_semantics<arbitrary>], iteration_bounds = array<i64: 2, 1>, scalar_prefetch = 0 : i64, scratch_operands = 1 : i64, tpu.core_type = #tpu.core_type<tc>, window_params = [{transform_indices = @transform_0, window_bounds = array<i64: 256, 128>}, {transform_indices = @transform_1, window_bounds = array<i64: 128, 128>}, {transform_indices = @transform_2, window_bounds = array<i64: 256, 128>}, {transform_indices = @transform_3, window_bounds = array<i64: 1, 2, 128>}]} {
    %c0_i32 = arith.constant 0 : i32
    %0 = arith.cmpi eq, %arg1, %c0_i32 : i32
    %1 = arith.extui %0 : i1 to i32
    %c0_i32_0 = arith.constant 0 : i32
    %2 = arith.cmpi ne, %1, %c0_i32_0 : i32
    scf.if %2 {
      %cst_10 = arith.constant 0.000000e+00 : f32
      %12 = vector.broadcast %cst_10 : f32 to vector<256x128xf32>
      %c0_11 = arith.constant 0 : index
      %c0_12 = arith.constant 0 : index
      %13 = vector.load %arg6[%c0_11, %c0_12] : memref<256x128xf32, #tpu.memory_space<vmem>>, vector<256x128xf32>
      tpu.vector_store %arg6[%c0_11, %c0_12], %12 {strides = array<i32>} : memref<256x128xf32, #tpu.memory_space<vmem>>, vector<256x128xf32>,
    } else {
    }
    %c0 = arith.constant 0 : index
    %c0_1 = arith.constant 0 : index
    %3 = vector.load %arg6[%c0, %c0_1] : memref<256x128xf32, #tpu.memory_space<vmem>>, vector<256x128xf32>
    %c0_2 = arith.constant 0 : index
    %c0_3 = arith.constant 0 : index
    %4 = vector.load %arg2[%c0_2, %c0_3] : memref<256x128xbf16, #tpu.memory_space<vmem>>, vector<256x128xbf16>
    %c0_4 = arith.constant 0 : index
    %c0_5 = arith.constant 0 : index
    %5 = vector.load %arg3[%c0_4, %c0_5] : memref<128x128xbf16, #tpu.memory_space<vmem>>, vector<128x128xbf16>
    %cst = arith.constant dense<0.000000e+00> : vector<256x128xf32>
    %6 = tpu.matmul %4, %5, %cst {dimension_numbers = #tpu.dot_dimension_numbers<[1], [0], [0], [1], [0, 0, 1, 1], [], []>} : vector<256x128xbf16>, vector<128x128xbf16>, vector<256x128xf32> -> vector<256x128xf32>
    %7 = arith.addf %3, %6 : vector<256x128xf32>
    %c0_6 = arith.constant 0 : index
    %c0_7 = arith.constant 0 : index
    %8 = vector.load %arg6[%c0_6, %c0_7] : memref<256x128xf32, #tpu.memory_space<vmem>>, vector<256x128xf32>
    tpu.vector_store %arg6[%c0_6, %c0_7], %7 {strides = array<i32>} : memref<256x128xf32, #tpu.memory_space<vmem>>, vector<256x128xf32>,
    %c0_i32_8 = arith.constant 0 : i32
    %9 = arith.cmpi eq, %arg1, %c0_i32_8 : i32
    %10 = arith.extui %9 : i1 to i32
    %c0_i32_9 = arith.constant 0 : i32
    %11 = arith.cmpi ne, %10, %c0_i32_9 : i32
    scf.if %11 {
      %c0_10 = arith.constant 0 : index
      %c0_11 = arith.constant 0 : index
      %12 = vector.load %arg6[%c0_10, %c0_11] : memref<256x128xf32, #tpu.memory_space<vmem>>, vector<256x128xf32>
      %c0_12 = arith.constant 0 : index
      %c0_13 = arith.constant 0 : index
      %13 = vector.load %arg4[%c0_12, %c0_13] : memref<256x128xf32, #tpu.memory_space<vmem>>, vector<256x128xf32>
      tpu.vector_store %arg4[%c0_12, %c0_13], %12 {strides = array<i32>} : memref<256x128xf32, #tpu.memory_space<vmem>>, vector<256x128xf32>,
      %cst_14 = arith.constant dense<0.000000e+00> : vector<128xf32>
      %14 = vector.multi_reduction <add>, %12, %cst_14 [0] : vector<256x128xf32> to vector<128xf32>
      %15 = vector.shape_cast %14 : vector<128xf32> to vector<1x128xf32>
      %16 = arith.mulf %12, %12 : vector<256x128xf32>
      %cst_15 = arith.constant dense<0.000000e+00> : vector<128xf32>
      %17 = vector.multi_reduction <add>, %16, %cst_15 [0] : vector<256x128xf32> to vector<128xf32>
      %18 = vector.shape_cast %17 : vector<128xf32> to vector<1x128xf32>
      %19 = tpu.concatenate %15, %18 in 0 : vector<1x128xf32>, vector<1x128xf32> -> vector<2x128xf32>
      %20 = vector.shape_cast %19 : vector<2x128xf32> to vector<1x2x128xf32>
      %c0_16 = arith.constant 0 : index
      %c0_17 = arith.constant 0 : index
      %c0_18 = arith.constant 0 : index
      %21 = vector.load %arg5[%c0_16, %c0_17, %c0_18] : memref<1x2x128xf32, #tpu.memory_space<vmem>>, vector<1x2x128xf32>
      tpu.vector_store %arg5[%c0_16, %c0_17, %c0_18], %20 {strides = array<i32>} : memref<1x2x128xf32, #tpu.memory_space<vmem>>, vector<1x2x128xf32>,
    } else {
    }
    return
  }
  func.func @transform_0(%arg0: i32, %arg1: i32) -> (i32, i32) {
    %c0_i32 = arith.constant 0 : i32
    return %arg0, %arg1 : i32, i32
  }
  func.func @transform_1(%arg0: i32, %arg1: i32) -> (i32, i32) {
    %c0_i32 = arith.constant 0 : i32
    %c0_i32_0 = arith.constant 0 : i32
    return %arg1, %c0_i32 : i32, i32
  }
  func.func @transform_2(%arg0: i32, %arg1: i32) -> (i32, i32) {
    %c0_i32 = arith.constant 0 : i32
    %c0_i32_0 = arith.constant 0 : i32
    return %arg0, %c0_i32 : i32, i32
  }
  func.func @transform_3(%arg0: i32, %arg1: i32) -> (i32, i32, i32) {
    %c0_i32 = arith.constant 0 : i32
    %c0_i32_0 = arith.constant 0 : i32
    %c0_i32_1 = arith.constant 0 : i32
    return %arg0, %c0_i32, %c0_i32_0 : i32, i32, i32
  }
}

module attributes {stable_mosaic.version = 11 : i64} {
  func.func @_bn2_add_bn_relu_kernel(%arg0: i32, %arg1: memref<256x128xf32, #tpu.memory_space<vmem>>, %arg2: memref<1x128xf32, #tpu.memory_space<vmem>>, %arg3: memref<1x128xf32, #tpu.memory_space<vmem>>, %arg4: memref<256x128xf32, #tpu.memory_space<vmem>>, %arg5: memref<1x128xf32, #tpu.memory_space<vmem>>, %arg6: memref<1x128xf32, #tpu.memory_space<vmem>>, %arg7: memref<256x128xf32, #tpu.memory_space<vmem>>) attributes {dimension_semantics = [#tpu.dimension_semantics<parallel>], iteration_bounds = array<i64: 2>, scalar_prefetch = 0 : i64, scratch_operands = 0 : i64, tpu.core_type = #tpu.core_type<tc>, window_params = [{transform_indices = @transform_0, window_bounds = array<i64: 256, 128>}, {pipeline_mode = #tpu.pipeline_mode<synchronous>, transform_indices = @transform_1, window_bounds = array<i64: 1, 128>}, {pipeline_mode = #tpu.pipeline_mode<synchronous>, transform_indices = @transform_2, window_bounds = array<i64: 1, 128>}, {transform_indices = @transform_3, window_bounds = array<i64: 256, 128>}, {pipeline_mode = #tpu.pipeline_mode<synchronous>, transform_indices = @transform_4, window_bounds = array<i64: 1, 128>}, {pipeline_mode = #tpu.pipeline_mode<synchronous>, transform_indices = @transform_5, window_bounds = array<i64: 1, 128>}, {transform_indices = @transform_6, window_bounds = array<i64: 256, 128>}]} {
    %c0 = arith.constant 0 : index
    %c0_0 = arith.constant 0 : index
    %0 = vector.load %arg1[%c0, %c0_0] : memref<256x128xf32, #tpu.memory_space<vmem>>, vector<256x128xf32>
    %c0_1 = arith.constant 0 : index
    %c0_2 = arith.constant 0 : index
    %1 = vector.load %arg2[%c0_1, %c0_2] : memref<1x128xf32, #tpu.memory_space<vmem>>, vector<1x128xf32>
    %2 = vector.broadcast %1 : vector<1x128xf32> to vector<256x128xf32>
    %3 = arith.mulf %0, %2 : vector<256x128xf32>
    %c0_3 = arith.constant 0 : index
    %c0_4 = arith.constant 0 : index
    %4 = vector.load %arg3[%c0_3, %c0_4] : memref<1x128xf32, #tpu.memory_space<vmem>>, vector<1x128xf32>
    %5 = vector.broadcast %4 : vector<1x128xf32> to vector<256x128xf32>
    %6 = arith.addf %3, %5 : vector<256x128xf32>
    %c0_5 = arith.constant 0 : index
    %c0_6 = arith.constant 0 : index
    %7 = vector.load %arg4[%c0_5, %c0_6] : memref<256x128xf32, #tpu.memory_space<vmem>>, vector<256x128xf32>
    %c0_7 = arith.constant 0 : index
    %c0_8 = arith.constant 0 : index
    %8 = vector.load %arg5[%c0_7, %c0_8] : memref<1x128xf32, #tpu.memory_space<vmem>>, vector<1x128xf32>
    %9 = vector.broadcast %8 : vector<1x128xf32> to vector<256x128xf32>
    %10 = arith.mulf %7, %9 : vector<256x128xf32>
    %c0_9 = arith.constant 0 : index
    %c0_10 = arith.constant 0 : index
    %11 = vector.load %arg6[%c0_9, %c0_10] : memref<1x128xf32, #tpu.memory_space<vmem>>, vector<1x128xf32>
    %12 = vector.broadcast %11 : vector<1x128xf32> to vector<256x128xf32>
    %13 = arith.addf %10, %12 : vector<256x128xf32>
    %14 = arith.addf %6, %13 : vector<256x128xf32>
    %cst = arith.constant 0.000000e+00 : f32
    %15 = vector.broadcast %cst : f32 to vector<256x128xf32>
    %16 = arith.maximumf %14, %15 : vector<256x128xf32>
    %c0_11 = arith.constant 0 : index
    %c0_12 = arith.constant 0 : index
    %17 = vector.load %arg7[%c0_11, %c0_12] : memref<256x128xf32, #tpu.memory_space<vmem>>, vector<256x128xf32>
    tpu.vector_store %arg7[%c0_11, %c0_12], %16 {strides = array<i32>} : memref<256x128xf32, #tpu.memory_space<vmem>>, vector<256x128xf32>,
    return
  }
  func.func @transform_0(%arg0: i32) -> (i32, i32) {
    %c0_i32 = arith.constant 0 : i32
    %c0_i32_0 = arith.constant 0 : i32
    return %arg0, %c0_i32 : i32, i32
  }
  func.func @transform_1(%arg0: i32) -> (i32, i32) {
    %c0_i32 = arith.constant 0 : i32
    %c0_i32_0 = arith.constant 0 : i32
    %c0_i32_1 = arith.constant 0 : i32
    return %c0_i32, %c0_i32_0 : i32, i32
  }
  func.func @transform_2(%arg0: i32) -> (i32, i32) {
    %c0_i32 = arith.constant 0 : i32
    %c0_i32_0 = arith.constant 0 : i32
    %c0_i32_1 = arith.constant 0 : i32
    return %c0_i32, %c0_i32_0 : i32, i32
  }
  func.func @transform_3(%arg0: i32) -> (i32, i32) {
    %c0_i32 = arith.constant 0 : i32
    %c0_i32_0 = arith.constant 0 : i32
    return %arg0, %c0_i32 : i32, i32
  }
  func.func @transform_4(%arg0: i32) -> (i32, i32) {
    %c0_i32 = arith.constant 0 : i32
    %c0_i32_0 = arith.constant 0 : i32
    %c0_i32_1 = arith.constant 0 : i32
    return %c0_i32, %c0_i32_0 : i32, i32
  }
  func.func @transform_5(%arg0: i32) -> (i32, i32) {
    %c0_i32 = arith.constant 0 : i32
    %c0_i32_0 = arith.constant 0 : i32
    %c0_i32_1 = arith.constant 0 : i32
    return %c0_i32, %c0_i32_0 : i32, i32
  }
  func.func @transform_6(%arg0: i32) -> (i32, i32) {
    %c0_i32 = arith.constant 0 : i32
    %c0_i32_0 = arith.constant 0 : i32
    return %arg0, %c0_i32 : i32, i32
  }
}

</mosaic_0001>

<llo_original>
// kernel: residual_block_forward.6
$region0: #{residual_block_forward.6}
  #allocation0 [shape = 'u32[]', space=smem, size = 0x4, offset = 0x4, fixed_abs, tag = 'smem constant byte address 0x4 - core index']
  #allocation1 [shape = 'u32[72,128]{1,0:T(1,128)}', space=vmem, size = 0x9000, scoped, tag = 'internal scratch']
  %s0 = inlined_call_operand.vmem [shape: f32[512,128], index: 0, kind: input, shape index: {}]
  %s1 = inlined_call_operand.vmem [shape: f32[1,128], index: 1, kind: input, shape index: {}]
  %s2 = inlined_call_operand.vmem [shape: f32[1,128], index: 2, kind: input, shape index: {}]
  %s3 = inlined_call_operand.vmem [shape: bf16[512,128], index: 3, kind: output, shape index: {}]
  %s4 = sld [smem:[#allocation0]]
  $region45: #{residual_block_forward.6} parent=0
    _
  %s6 = ssub.s32 1, %s4
  %s7 = scalar_select 0, %s6, %s4
  loop: start=0, step=1, limit=4
  $region2: #{residual_block_forward.6} parent=0 // loop_pre_header
    _
  $region3: #{residual_block_forward.6} parent=0 // loop_header
    %s9 = sphi 0, %s13
    %p10 = scmp.ge.s32.totalorder %s9, 4
    %s19 = sphi 0, %s21
    %s22 = sphi 0, %s19
    %s23 = sphi 0, %s22
    %s39 = sphi 0, %s23
    %s43 = sphi 0, %s43
    %s45 = sphi 0, %s43
    %s46 = sphi 0, %s45
    %s60 = sphi 0, %s46
    %s64 = sphi 0, %s64
    %s66 = sphi 0, %s64
    %s67 = sphi 0, %s66
    %s81 = sphi 0, %s67
    %s87 = sphi 0, %s89
    %s90 = sphi 0, %s87
    %s91 = sphi 0, %s90
    %s107 = sphi 0, %s91
  $region4: #{residual_block_forward.6} parent=0 // loop_header_branch
    %12 = sbr.rel (%p10) target = $region8
  $region5: #{residual_block_forward.6} parent=0 // loop_body
    %s14 = ssub.s32 %s9, 1
    %s15 = ssub.s32 %s9, 2
    %s16 = sadd.s32 %s9, 1
    %s17 = ssub.s32 %s9, %s16
    %p18 = scmp.eq.s32.totalorder %s17, 0
    %s20 = sadd.s32 %s19, 1
    %s21 = scalar_select %p18, %s19, %s20
    %p24 = pneg %p18
    %p25 = scmp.eq.s32.totalorder %s9, 1
    %p26 = por %p24, %p25
    %p27 = scmp.ne.s32.totalorder %s19, %s22
    %p28 = scmp.eq.s32.totalorder %s9, 0
    %p29 = por %p27, %p28
    %p30 = scmp.ne.s32.totalorder %s19, %s22
    %p31 = scmp.eq.s32.totalorder %s14, 1
    %p32 = por %p30, %p31
    %p33 = scmp.ne.s32.totalorder %s22, %s23
    %p34 = scmp.eq.s32.totalorder %s14, 0
    %p35 = por %p33, %p34
    %p36 = scmp.ne.s32.totalorder %s22, %s23
    %p37 = scmp.eq.s32.totalorder %s15, 1
    %p38 = por %p36, %p37
    %p40 = scmp.ne.s32.totalorder %s23, %s39
    %p41 = scmp.eq.s32.totalorder %s15, 0
    %p42 = por %p40, %p41
    %s44 = sadd.s32 %s43, 1
    %p47 = scmp.eq.s32.totalorder %s9, 1
    %p48 = scmp.ne.s32.totalorder %s43, %s45
    %p49 = scmp.eq.s32.totalorder %s9, 0
    %p50 = por %p48, %p49
    %p51 = scmp.ne.s32.totalorder %s43, %s45
    %p52 = scmp.eq.s32.totalorder %s14, 1
    %p53 = por %p51, %p52
    %p54 = scmp.ne.s32.totalorder %s45, %s46
    %p55 = scmp.eq.s32.totalorder %s14, 0
    %p56 = por %p54, %p55
    %p57 = scmp.ne.s32.totalorder %s45, %s46
    %p58 = scmp.eq.s32.totalorder %s15, 1
    %p59 = por %p57, %p58
    %p61 = scmp.ne.s32.totalorder %s46, %s60
    %p62 = scmp.eq.s32.totalorder %s15, 0
    %p63 = por %p61, %p62
    %s65 = sadd.s32 %s64, 1
    %p68 = scmp.eq.s32.totalorder %s9, 1
    %p69 = scmp.ne.s32.totalorder %s64, %s66
    %p70 = scmp.eq.s32.totalorder %s9, 0
    %p71 = por %p69, %p70
    %p72 = scmp.ne.s32.totalorder %s64, %s66
    %p73 = scmp.eq.s32.totalorder %s14, 1
    %p74 = por %p72, %p73
    %p75 = scmp.ne.s32.totalorder %s66, %s67
    %p76 = scmp.eq.s32.totalorder %s14, 0
    %p77 = por %p75, %p76
    %p78 = scmp.ne.s32.totalorder %s66, %s67
    %p79 = scmp.eq.s32.totalorder %s15, 1
    %p80 = por %p78, %p79
    %p82 = scmp.ne.s32.totalorder %s67, %s81
    %p83 = scmp.eq.s32.totalorder %s15, 0
    %p84 = por %p82, %p83
    %s85 = ssub.s32 %s9, %s16
    %p86 = scmp.eq.s32.totalorder %s85, 0
    %s88 = sadd.s32 %s87, 1
    %s89 = scalar_select %p86, %s87, %s88
    %p92 = pneg %p86
    %p93 = scmp.eq.s32.totalorder %s9, 1
    %p94 = por %p92, %p93
    %p95 = scmp.ne.s32.totalorder %s87, %s90
    %p96 = scmp.eq.s32.totalorder %s9, 0
    %p97 = por %p95, %p96
    %p98 = scmp.ne.s32.totalorder %s87, %s90
    %p99 = scmp.eq.s32.totalorder %s14, 1
    %p100 = por %p98, %p99
    %p101 = scmp.ne.s32.totalorder %s90, %s91
    %p102 = scmp.eq.s32.totalorder %s14, 0
    %p103 = por %p101, %p102
    %p104 = scmp.ne.s32.totalorder %s90, %s91
    %p105 = scmp.eq.s32.totalorder %s15, 1
    %p106 = por %p104, %p105
    %p108 = scmp.ne.s32.totalorder %s91, %s107
    %p109 = scmp.eq.s32.totalorder %s15, 0
    %p110 = por %p108, %p109
    %p111 = scmp.le.s32.totalorder 1, %s9
    %p112 = scmp.lt.s32.totalorder %s9, 3
    %p113 = pnand %p111, %p112
    %p114 = pneg %p113
    // Predicated region
    $region9: #{residual_block_forward.6} parent=5 // pred_check
      _
    $region10: #{residual_block_forward.6} parent=5 // pred_check_branch
      %116 = sbr.rel (%p113) target = $region12
    $region11: #{residual_block_forward.6} parent=5 // pred_region
      %s117 = ssub.s32 %s9, 1
      // Predicated region
      $region13: #{residual_block_forward.6} parent=11 // pred_check
        %p118 = pneg %p56
      $region14: #{residual_block_forward.6} parent=11 // pred_check_branch
        %120 = sbr.rel (%p118) target = $region16
      $region15: #{residual_block_forward.6} parent=11 // pred_region
        _
      $region16: #{residual_block_forward.6} parent=11 // pred_fallthru
        _
      // Predicated region
      $region17: #{residual_block_forward.6} parent=11 // pred_check
        %p121 = pneg %p77
      $region18: #{residual_block_forward.6} parent=11 // pred_check_branch
        %123 = sbr.rel (%p121) target = $region20
      $region19: #{residual_block_forward.6} parent=11 // pred_region
        _
      $region20: #{residual_block_forward.6} parent=11 // pred_fallthru
        _
    $region12: #{residual_block_forward.6} parent=5 // pred_fallthru
      _
    %p124 = scmp.lt.s32.totalorder %s9, 2
    // Predicated region
    $region21: #{residual_block_forward.6} parent=5 // pred_check
      %p125 = pneg %p124
    $region22: #{residual_block_forward.6} parent=5 // pred_check_branch
      %127 = sbr.rel (%p125) target = $region24
    $region23: #{residual_block_forward.6} parent=5 // pred_region
      // Predicated region
      $region25: #{residual_block_forward.6} parent=23 // pred_check
        %p128 = pneg %p29
      $region26: #{residual_block_forward.6} parent=23 // pred_check_branch
        %130 = sbr.rel (%p128) target = $region28
      $region27: #{residual_block_forward.6} parent=23 // pred_region
        %s131 = smul.u32 32, %s9
        %p132 = scmp.lt.s32.totalorder %s131, 63
        %s133 = scalar_select %p132, %s131, 63
        %s134 = smul.addr %s133, 8
        %s135 = scalar_lea.vmem %s0, %s134
        %s136 = smul.u32 32, %s9
      $region28: #{residual_block_forward.6} parent=23 // pred_fallthru
        _
    $region24: #{residual_block_forward.6} parent=5 // pred_fallthru
      _
    %p137 = scmp.le.s32.totalorder 1, %s9
    %p138 = scmp.lt.s32.totalorder %s9, 3
    %p139 = pnand %p137, %p138
    %p140 = pneg %p139
    // Predicated region
    $region29: #{residual_block_forward.6} parent=5 // pred_check
      _
    $region30: #{residual_block_forward.6} parent=5 // pred_check_branch
      %142 = sbr.rel (%p139) target = $region32
    $region31: #{residual_block_forward.6} parent=5 // pred_region
      %s143 = ssub.s32 %s9, 1
      %s144 = smul.u32 32, %s14
      %p145 = scmp.lt.s32.totalorder %s144, 63
      %s146 = scalar_select %p145, %s144, 63
      %s147 = smul.addr %s146, 8
      %s148 = scalar_lea.vmem %s0, %s147
      %p149 = pneg %p35
      %p150 = pneg %p32
      %p151 = pneg %p56
      %p152 = pneg %p53
      %p153 = pneg %p77
      %p154 = pneg %p74
      %p155 = pneg %p103
      %p156 = pneg %p100
      %s157 = smul.u32 32, %s14
      %p158 = scmp.lt.s32.totalorder %s157, 63
      %s159 = scalar_select %p158, %s157, 63
      %s160 = smul.addr %s159, 4
      %s161 = scalar_lea.vmem %s3, %s160
      %s162 = smul.u32 32, %s14
      %p163 = scmp.lt.s32.totalorder %s162, 63
      %s164 = scalar_select %p163, %s162, 63
      %s165 = smul.addr %s164, 8
      %s166 = scalar_lea.vmem %s0, %s165
      %s167 = smul.u32 32, %s14
      %s168 = smul.u32 32, %s14
      %p169 = scmp.lt.s32.totalorder %s168, 63
      %s170 = scalar_select %p169, %s168, 63
      %s171 = smul.addr %s170, 4
      %s172 = scalar_lea.vmem %s3, %s171
      %s173 = smul.u32 32, %s14
      %v174 = vld [vmem:[%s166] sm:$0xff]
      %v175 = vld [vmem:[%s166 + $0x8] sm:$0xff]
      %v176 = vld [vmem:[%s166 + $0x10] sm:$0xff]
      %v177 = vld [vmem:[%s166 + $0x18] sm:$0xff]
      %v178 = vld [vmem:[%s166 + $0x20] sm:$0xff]
      %v179 = vld [vmem:[%s166 + $0x28] sm:$0xff]
      %v180 = vld [vmem:[%s166 + $0x30] sm:$0xff]
      %v181 = vld [vmem:[%s166 + $0x38] sm:$0xff]
      %v182 = vld [vmem:[%s166 + $0x40] sm:$0xff]
      %v183 = vld [vmem:[%s166 + $0x48] sm:$0xff]
      %v184 = vld [vmem:[%s166 + $0x50] sm:$0xff]
      %v185 = vld [vmem:[%s166 + $0x58] sm:$0xff]
      %v186 = vld [vmem:[%s166 + $0x60] sm:$0xff]
      %v187 = vld [vmem:[%s166 + $0x68] sm:$0xff]
      %v188 = vld [vmem:[%s166 + $0x70] sm:$0xff]
      %v189 = vld [vmem:[%s166 + $0x78] sm:$0xff]
      %v190 = vld [vmem:[%s166 + $0x80] sm:$0xff]
      %v191 = vld [vmem:[%s166 + $0x88] sm:$0xff]
      %v192 = vld [vmem:[%s166 + $0x90] sm:$0xff]
      %v193 = vld [vmem:[%s166 + $0x98] sm:$0xff]
      %v194 = vld [vmem:[%s166 + $0xa0] sm:$0xff]
      %v195 = vld [vmem:[%s166 + $0xa8] sm:$0xff]
      %v196 = vld [vmem:[%s166 + $0xb0] sm:$0xff]
      %v197 = vld [vmem:[%s166 + $0xb8] sm:$0xff]
      %v198 = vld [vmem:[%s166 + $0xc0] sm:$0xff]
      %v199 = vld [vmem:[%s166 + $0xc8] sm:$0xff]
      %v200 = vld [vmem:[%s166 + $0xd0] sm:$0xff]
      %v201 = vld [vmem:[%s166 + $0xd8] sm:$0xff]
      %v202 = vld [vmem:[%s166 + $0xe0] sm:$0xff]
      %v203 = vld [vmem:[%s166 + $0xe8] sm:$0xff]
      %v204 = vld [vmem:[%s166 + $0xf0] sm:$0xff]
      %v205 = vld [vmem:[%s166 + $0xf8] sm:$0xff]
      %v206 = vld [vmem:[%s1] sm:$0x1]
      %v208 = vperm.slane %v206, 0
      %v210 = vmul.f32 %v174, %v208
      %v211 = vmul.f32 %v175, %v208
      %v212 = vmul.f32 %v176, %v208
      %v213 = vmul.f32 %v177, %v208
      %v214 = vmul.f32 %v178, %v208
      %v215 = vmul.f32 %v179, %v208
      %v216 = vmul.f32 %v180, %v208
      %v217 = vmul.f32 %v181, %v208
      %v218 = vmul.f32 %v182, %v208
      %v219 = vmul.f32 %v183, %v208
      %v220 = vmul.f32 %v184, %v208
      %v221 = vmul.f32 %v185, %v208
      %v222 = vmul.f32 %v186, %v208
      %v223 = vmul.f32 %v187, %v208
      %v224 = vmul.f32 %v188, %v208
      %v225 = vmul.f32 %v189, %v208
      %v226 = vmul.f32 %v190, %v208
      %v227 = vmul.f32 %v191, %v208
      %v228 = vmul.f32 %v192, %v208
      %v229 = vmul.f32 %v193, %v208
      %v230 = vmul.f32 %v194, %v208
      %v231 = vmul.f32 %v195, %v208
      %v232 = vmul.f32 %v196, %v208
      %v233 = vmul.f32 %v197, %v208
      %v234 = vmul.f32 %v198, %v208
      %v235 = vmul.f32 %v199, %v208
      %v236 = vmul.f32 %v200, %v208
      %v237 = vmul.f32 %v201, %v208
      %v238 = vmul.f32 %v202, %v208
      %v239 = vmul.f32 %v203, %v208
      %v240 = vmul.f32 %v204, %v208
      %v241 = vmul.f32 %v205, %v208
      %v242 = vld [vmem:[%s2] sm:$0x1]
      %v244 = vperm.slane %v242, 0
      %v246 = vadd.f32 %v210, %v244
      %v247 = vadd.f32 %v211, %v244
      %v248 = vadd.f32 %v212, %v244
      %v249 = vadd.f32 %v213, %v244
      %v250 = vadd.f32 %v214, %v244
      %v251 = vadd.f32 %v215, %v244
      %v252 = vadd.f32 %v216, %v244
      %v253 = vadd.f32 %v217, %v244
      %v254 = vadd.f32 %v218, %v244
      %v255 = vadd.f32 %v219, %v244
      %v256 = vadd.f32 %v220, %v244
      %v257 = vadd.f32 %v221, %v244
      %v258 = vadd.f32 %v222, %v244
      %v259 = vadd.f32 %v223, %v244
      %v260 = vadd.f32 %v224, %v244
      %v261 = vadd.f32 %v225, %v244
      %v262 = vadd.f32 %v226, %v244
      %v263 = vadd.f32 %v227, %v244
      %v264 = vadd.f32 %v228, %v244
      %v265 = vadd.f32 %v229, %v244
      %v266 = vadd.f32 %v230, %v244
      %v267 = vadd.f32 %v231, %v244
      %v268 = vadd.f32 %v232, %v244
      %v269 = vadd.f32 %v233, %v244
      %v270 = vadd.f32 %v234, %v244
      %v271 = vadd.f32 %v235, %v244
      %v272 = vadd.f32 %v236, %v244
      %v273 = vadd.f32 %v237, %v244
      %v274 = vadd.f32 %v238, %v244
      %v275 = vadd.f32 %v239, %v244
      %v276 = vadd.f32 %v240, %v244
      %v277 = vadd.f32 %v241, %v244
      %v278 = vmax.f32 %v246, 0.0
      %v279 = vmax.f32 %v247, 0.0
      %v280 = vmax.f32 %v248, 0.0
      %v281 = vmax.f32 %v249, 0.0
      %v282 = vmax.f32 %v250, 0.0
      %v283 = vmax.f32 %v251, 0.0
      %v284 = vmax.f32 %v252, 0.0
      %v285 = vmax.f32 %v253, 0.0
      %v286 = vmax.f32 %v254, 0.0
      %v287 = vmax.f32 %v255, 0.0
      %v288 = vmax.f32 %v256, 0.0
      %v289 = vmax.f32 %v257, 0.0
      %v290 = vmax.f32 %v258, 0.0
      %v291 = vmax.f32 %v259, 0.0
      %v292 = vmax.f32 %v260, 0.0
      %v293 = vmax.f32 %v261, 0.0
      %v294 = vmax.f32 %v262, 0.0
      %v295 = vmax.f32 %v263, 0.0
      %v296 = vmax.f32 %v264, 0.0
      %v297 = vmax.f32 %v265, 0.0
      %v298 = vmax.f32 %v266, 0.0
      %v299 = vmax.f32 %v267, 0.0
      %v300 = vmax.f32 %v268, 0.0
      %v301 = vmax.f32 %v269, 0.0
      %v302 = vmax.f32 %v270, 0.0
      %v303 = vmax.f32 %v271, 0.0
      %v304 = vmax.f32 %v272, 0.0
      %v305 = vmax.f32 %v273, 0.0
      %v306 = vmax.f32 %v274, 0.0
      %v307 = vmax.f32 %v275, 0.0
      %v308 = vmax.f32 %v276, 0.0
      %v309 = vmax.f32 %v277, 0.0
      %v310 = vpack.c.bf16 %v278, %v278
      %v311 = vpack.c.bf16 %v279, %v279
      %v312 = vpack.c.bf16 %v280, %v280
      %v313 = vpack.c.bf16 %v281, %v281
      %v314 = vpack.c.bf16 %v282, %v282
      %v315 = vpack.c.bf16 %v283, %v283
      %v316 = vpack.c.bf16 %v284, %v284
      %v317 = vpack.c.bf16 %v285, %v285
      %v318 = vpack.c.bf16 %v286, %v286
      %v319 = vpack.c.bf16 %v287, %v287
      %v320 = vpack.c.bf16 %v288, %v288
      %v321 = vpack.c.bf16 %v289, %v289
      %v322 = vpack.c.bf16 %v290, %v290
      %v323 = vpack.c.bf16 %v291, %v291
      %v324 = vpack.c.bf16 %v292, %v292
      %v325 = vpack.c.bf16 %v293, %v293
      %v326 = vpack.c.bf16 %v294, %v294
      %v327 = vpack.c.bf16 %v295, %v295
      %v328 = vpack.c.bf16 %v296, %v296
      %v329 = vpack.c.bf16 %v297, %v297
      %v330 = vpack.c.bf16 %v298, %v298
      %v331 = vpack.c.bf16 %v299, %v299
      %v332 = vpack.c.bf16 %v300, %v300
      %v333 = vpack.c.bf16 %v301, %v301
      %v334 = vpack.c.bf16 %v302, %v302
      %v335 = vpack.c.bf16 %v303, %v303
      %v336 = vpack.c.bf16 %v304, %v304
      %v337 = vpack.c.bf16 %v305, %v305
      %v338 = vpack.c.bf16 %v306, %v306
      %v339 = vpack.c.bf16 %v307, %v307
      %v340 = vpack.c.bf16 %v308, %v308
      %v341 = vpack.c.bf16 %v309, %v309
      %342 = vst [vmem:[%s172] sm:$0xf] %v310
      %343 = vst [vmem:[%s172 + $0x4] sm:$0xf] %v311
      %344 = vst [vmem:[%s172 + $0x8] sm:$0xf] %v312
      %345 = vst [vmem:[%s172 + $0xc] sm:$0xf] %v313
      %346 = vst [vmem:[%s172 + $0x10] sm:$0xf] %v314
      %347 = vst [vmem:[%s172 + $0x14] sm:$0xf] %v315
      %348 = vst [vmem:[%s172 + $0x18] sm:$0xf] %v316
      %349 = vst [vmem:[%s172 + $0x1c] sm:$0xf] %v317
      %350 = vst [vmem:[%s172 + $0x20] sm:$0xf] %v318
      %351 = vst [vmem:[%s172 + $0x24] sm:$0xf] %v319
      %352 = vst [vmem:[%s172 + $0x28] sm:$0xf] %v320
      %353 = vst [vmem:[%s172 + $0x2c] sm:$0xf] %v321
      %354 = vst [vmem:[%s172 + $0x30] sm:$0xf] %v322
      %355 = vst [vmem:[%s172 + $0x34] sm:$0xf] %v323
      %356 = vst [vmem:[%s172 + $0x38] sm:$0xf] %v324
      %357 = vst [vmem:[%s172 + $0x3c] sm:$0xf] %v325
      %358 = vst [vmem:[%s172 + $0x40] sm:$0xf] %v326
      %359 = vst [vmem:[%s172 + $0x44] sm:$0xf] %v327
      %360 = vst [vmem:[%s172 + $0x48] sm:$0xf] %v328
      %361 = vst [vmem:[%s172 + $0x4c] sm:$0xf] %v329
      %362 = vst [vmem:[%s172 + $0x50] sm:$0xf] %v330
      %363 = vst [vmem:[%s172 + $0x54] sm:$0xf] %v331
      %364 = vst [vmem:[%s172 + $0x58] sm:$0xf] %v332
      %365 = vst [vmem:[%s172 + $0x5c] sm:$0xf] %v333
      %366 = vst [vmem:[%s172 + $0x60] sm:$0xf] %v334
      %367 = vst [vmem:[%s172 + $0x64] sm:$0xf] %v335
      %368 = vst [vmem:[%s172 + $0x68] sm:$0xf] %v336
      %369 = vst [vmem:[%s172 + $0x6c] sm:$0xf] %v337
      %370 = vst [vmem:[%s172 + $0x70] sm:$0xf] %v338
      %371 = vst [vmem:[%s172 + $0x74] sm:$0xf] %v339
      %372 = vst [vmem:[%s172 + $0x78] sm:$0xf] %v340
      %373 = vst [vmem:[%s172 + $0x7c] sm:$0xf] %v341
      %s374 = smul.u32 32, %s14
      %p375 = scmp.lt.s32.totalorder %s374, 63
      %s376 = scalar_select %p375, %s374, 63
      %s377 = smul.addr %s376, 4
      %s378 = scalar_lea.vmem %s3, %s377
      // Predicated region
      $region33: #{residual_block_forward.6} parent=31 // pred_check
        %p379 = pneg %p100
      $region34: #{residual_block_forward.6} parent=31 // pred_check_branch
        %381 = sbr.rel (%p379) target = $region36
      $region35: #{residual_block_forward.6} parent=31 // pred_region
        %s382 = smul.u32 32, %s14
      $region36: #{residual_block_forward.6} parent=31 // pred_fallthru
        _
    $region32: #{residual_block_forward.6} parent=5 // pred_fallthru
      _
    %p383 = scmp.le.s32.totalorder 2, %s9
    // Predicated region
    $region37: #{residual_block_forward.6} parent=5 // pred_check
      %p384 = pneg %p383
    $region38: #{residual_block_forward.6} parent=5 // pred_check_branch
      %386 = sbr.rel (%p384) target = $region40
    $region39: #{residual_block_forward.6} parent=5 // pred_region
      %s387 = ssub.s32 %s9, 2
      // Predicated region
      $region41: #{residual_block_forward.6} parent=39 // pred_check
        %p388 = pneg %p106
      $region42: #{residual_block_forward.6} parent=39 // pred_check_branch
        %390 = sbr.rel (%p388) target = $region44
      $region43: #{residual_block_forward.6} parent=39 // pred_region
        %s391 = smul.u32 32, %s15
        %p392 = scmp.lt.s32.totalorder %s391, 63
        %s393 = scalar_select %p392, %s391, 63
        %s394 = smul.addr %s393, 4
        %s395 = scalar_lea.vmem %s3, %s394
      $region44: #{residual_block_forward.6} parent=39 // pred_fallthru
        _
    $region40: #{residual_block_forward.6} parent=5 // pred_fallthru
      _
  $region6: #{residual_block_forward.6} parent=0 // loop_footer
    %s13 = sadd.s32 1, %s9
  $region7: #{residual_block_forward.6} parent=0 // loop_footer_branch
    %8 = sbr.rel target = $region3
  $region8: #{residual_block_forward.6} parent=0 // loop_exit
    _

// kernel: residual_block_forward.5
$region0: #{residual_block_forward.5}
  #allocation0 [shape = 'u32[]', space=smem, size = 0x4, offset = 0x4, fixed_abs, tag = 'smem constant byte address 0x4 - core index']
  #allocation1 [shape = 'u32[72,128]{1,0:T(1,128)}', space=vmem, size = 0x9000, scoped, tag = 'internal scratch']
  #allocation2 [shape = 'f32[256,128]{1,0:T(8,128)}', space=vmem, size = 0x20000, scoped, tag = 'scratch operand']
  %s0 = inlined_call_operand.vmem [shape: bf16[512,128], index: 0, kind: input, shape index: {}]
  %s1 = inlined_call_operand.vmem [shape: bf16[128,128], index: 1, kind: input, shape index: {}]
  %s2 = inlined_call_operand.vmem [shape: f32[512,128], index: 2, kind: output, shape index: {0}]
  %s3 = inlined_call_operand.vmem [shape: f32[2,2,128], index: 3, kind: output, shape index: {1}]
  %4 = xla_tuple %s2, %s3
  %s5 = sld [smem:[#allocation0]]
  $region57: #{residual_block_forward.5} parent=0
    _
  %s7 = ssub.s32 1, %s5
  %s8 = scalar_select 0, %s7, %s5
  loop: start=0, step=1, limit=4
  $region2: #{residual_block_forward.5} parent=0 // loop_pre_header
    _
  $region3: #{residual_block_forward.5} parent=0 // loop_header
    %s10 = sphi 0, %s14
    %p11 = scmp.ge.s32.totalorder %s10, 4
    %s17 = sphi 0, %s29
    %s18 = sphi 0, %s25
    %s19 = sphi 0, %s17
    %s20 = sphi 0, %s18
    %s21 = sphi 0, %s19
    %s22 = sphi 0, %s20
    %s34 = sphi 0, %s36
    %s37 = sphi 0, %s34
    %s38 = sphi 0, %s37
    %s54 = sphi 0, %s38
    %s60 = sphi 0, %s62
    %s63 = sphi 0, %s60
    %s64 = sphi 0, %s63
    %s80 = sphi 0, %s64
    %s86 = sphi 0, %s88
    %s89 = sphi 0, %s86
    %s90 = sphi 0, %s89
    %s106 = sphi 0, %s90
    %s112 = sphi 0, %s114
    %s115 = sphi 0, %s112
    %s116 = sphi 0, %s115
    %s132 = sphi 0, %s116
  $region4: #{residual_block_forward.5} parent=0 // loop_header_branch
    %13 = sbr.rel (%p11) target = $region8
  $region5: #{residual_block_forward.5} parent=0 // loop_body
    %s15 = ssub.s32 %s10, 1
    %s16 = ssub.s32 %s10, 2
    %s23 = sadd.s32 1, %s18
    %p24 = scmp.ge.s32.totalorder %s23, 1
    %s25 = scalar_select %p24, 0, %s23
    %s26 = sadd.s32 1, %s17
    %s27 = scalar_select %p24, %s26, %s17
    %p28 = scmp.ge.s32.totalorder %s27, 2
    %s29 = scalar_select %p28, 0, %s27
    %s30 = ssub.s32 %s17, %s29
    %s31 = ssub.s32 %s18, %s25
    %s32 = sor.u32 %s30, %s31
    %p33 = scmp.eq.s32.totalorder %s32, 0
    %s35 = sadd.s32 %s34, 1
    %s36 = scalar_select %p33, %s34, %s35
    %p39 = pneg %p33
    %p40 = scmp.eq.s32.totalorder %s10, 1
    %p41 = por %p39, %p40
    %p42 = scmp.ne.s32.totalorder %s34, %s37
    %p43 = scmp.eq.s32.totalorder %s10, 0
    %p44 = por %p42, %p43
    %p45 = scmp.ne.s32.totalorder %s34, %s37
    %p46 = scmp.eq.s32.totalorder %s15, 1
    %p47 = por %p45, %p46
    %p48 = scmp.ne.s32.totalorder %s37, %s38
    %p49 = scmp.eq.s32.totalorder %s15, 0
    %p50 = por %p48, %p49
    %p51 = scmp.ne.s32.totalorder %s37, %s38
    %p52 = scmp.eq.s32.totalorder %s16, 1
    %p53 = por %p51, %p52
    %p55 = scmp.ne.s32.totalorder %s38, %s54
    %p56 = scmp.eq.s32.totalorder %s16, 0
    %p57 = por %p55, %p56
    %s58 = ssub.s32 %s18, %s25
    %p59 = scmp.eq.s32.totalorder %s58, 0
    %s61 = sadd.s32 %s60, 1
    %s62 = scalar_select %p59, %s60, %s61
    %p65 = pneg %p59
    %p66 = scmp.eq.s32.totalorder %s10, 1
    %p67 = por %p65, %p66
    %p68 = scmp.ne.s32.totalorder %s60, %s63
    %p69 = scmp.eq.s32.totalorder %s10, 0
    %p70 = por %p68, %p69
    %p71 = scmp.ne.s32.totalorder %s60, %s63
    %p72 = scmp.eq.s32.totalorder %s15, 1
    %p73 = por %p71, %p72
    %p74 = scmp.ne.s32.totalorder %s63, %s64
    %p75 = scmp.eq.s32.totalorder %s15, 0
    %p76 = por %p74, %p75
    %p77 = scmp.ne.s32.totalorder %s63, %s64
    %p78 = scmp.eq.s32.totalorder %s16, 1
    %p79 = por %p77, %p78
    %p81 = scmp.ne.s32.totalorder %s64, %s80
    %p82 = scmp.eq.s32.totalorder %s16, 0
    %p83 = por %p81, %p82
    %s84 = ssub.s32 %s17, %s29
    %p85 = scmp.eq.s32.totalorder %s84, 0
    %s87 = sadd.s32 %s86, 1
    %s88 = scalar_select %p85, %s86, %s87
    %p91 = pneg %p85
    %p92 = scmp.eq.s32.totalorder %s10, 1
    %p93 = por %p91, %p92
    %p94 = scmp.ne.s32.totalorder %s86, %s89
    %p95 = scmp.eq.s32.totalorder %s10, 0
    %p96 = por %p94, %p95
    %p97 = scmp.ne.s32.totalorder %s86, %s89
    %p98 = scmp.eq.s32.totalorder %s15, 1
    %p99 = por %p97, %p98
    %p100 = scmp.ne.s32.totalorder %s89, %s90
    %p101 = scmp.eq.s32.totalorder %s15, 0
    %p102 = por %p100, %p101
    %p103 = scmp.ne.s32.totalorder %s89, %s90
    %p104 = scmp.eq.s32.totalorder %s16, 1
    %p105 = por %p103, %p104
    %p107 = scmp.ne.s32.totalorder %s90, %s106
    %p108 = scmp.eq.s32.totalorder %s16, 0
    %p109 = por %p107, %p108
    %s110 = ssub.s32 %s17, %s29
    %p111 = scmp.eq.s32.totalorder %s110, 0
    %s113 = sadd.s32 %s112, 1
    %s114 = scalar_select %p111, %s112, %s113
    %p117 = pneg %p111
    %p118 = scmp.eq.s32.totalorder %s10, 1
    %p119 = por %p117, %p118
    %p120 = scmp.ne.s32.totalorder %s112, %s115
    %p121 = scmp.eq.s32.totalorder %s10, 0
    %p122 = por %p120, %p121
    %p123 = scmp.ne.s32.totalorder %s112, %s115
    %p124 = scmp.eq.s32.totalorder %s15, 1
    %p125 = por %p123, %p124
    %p126 = scmp.ne.s32.totalorder %s115, %s116
    %p127 = scmp.eq.s32.totalorder %s15, 0
    %p128 = por %p126, %p127
    %p129 = scmp.ne.s32.totalorder %s115, %s116
    %p130 = scmp.eq.s32.totalorder %s16, 1
    %p131 = por %p129, %p130
    %p133 = scmp.ne.s32.totalorder %s116, %s132
    %p134 = scmp.eq.s32.totalorder %s16, 0
    %p135 = por %p133, %p134
    %p136 = scmp.le.s32.totalorder 1, %s10
    %p137 = scmp.lt.s32.totalorder %s10, 3
    %p138 = pnand %p136, %p137
    %p139 = pneg %p138
    // Predicated region
    $region9: #{residual_block_forward.5} parent=5 // pred_check
      _
    $region10: #{residual_block_forward.5} parent=5 // pred_check_branch
      %141 = sbr.rel (%p138) target = $region12
    $region11: #{residual_block_forward.5} parent=5 // pred_region
      %s142 = ssub.s32 %s10, 1
      // Predicated region
      $region13: #{residual_block_forward.5} parent=11 // pred_check
        %p143 = pneg %p76
      $region14: #{residual_block_forward.5} parent=11 // pred_check_branch
        %145 = sbr.rel (%p143) target = $region16
      $region15: #{residual_block_forward.5} parent=11 // pred_region
        %s146 = smul.u32 16, %s20
        %p147 = scmp.lt.s32.totalorder %s146, 15
        %s148 = scalar_select %p147, %s146, 15
        %s149 = smul.addr %s148, 4
        %s150 = scalar_lea.vmem %s1, %s149
        %s151 = smul.u32 16, %s20
      $region16: #{residual_block_forward.5} parent=11 // pred_fallthru
        _
    $region12: #{residual_block_forward.5} parent=5 // pred_fallthru
      _
    %p152 = scmp.lt.s32.totalorder %s10, 2
    // Predicated region
    $region17: #{residual_block_forward.5} parent=5 // pred_check
      %p153 = pneg %p152
    $region18: #{residual_block_forward.5} parent=5 // pred_check_branch
      %155 = sbr.rel (%p153) target = $region20
    $region19: #{residual_block_forward.5} parent=5 // pred_region
      // Predicated region
      $region21: #{residual_block_forward.5} parent=19 // pred_check
        %p156 = pneg %p44
      $region22: #{residual_block_forward.5} parent=19 // pred_check_branch
        %158 = sbr.rel (%p156) target = $region24
      $region23: #{residual_block_forward.5} parent=19 // pred_region
        %s159 = smul.u32 32, %s17
        %p160 = scmp.lt.s32.totalorder %s159, 63
        %s161 = scalar_select %p160, %s159, 63
        %p162 = scmp.lt.s32.totalorder %s18, 0
        %s163 = scalar_select %p162, %s18, 0
        %s164 = sadd.s32 %s163, %s161
        %s165 = smul.addr %s164, 4
        %s166 = scalar_lea.vmem %s0, %s165
        %s167 = smul.u32 32, %s17
      $region24: #{residual_block_forward.5} parent=19 // pred_fallthru
        _
    $region20: #{residual_block_forward.5} parent=5 // pred_fallthru
      _
    %p168 = scmp.le.s32.totalorder 1, %s10
    %p169 = scmp.lt.s32.totalorder %s10, 3
    %p170 = pnand %p168, %p169
    %p171 = pneg %p170
    // Predicated region
    $region25: #{residual_block_forward.5} parent=5 // pred_check
      _
    $region26: #{residual_block_forward.5} parent=5 // pred_check_branch
      %173 = sbr.rel (%p170) target = $region28
    $region27: #{residual_block_forward.5} parent=5 // pred_region
      %s174 = ssub.s32 %s10, 1
      %s175 = smul.u32 32, %s19
      %p176 = scmp.lt.s32.totalorder %s175, 63
      %s177 = scalar_select %p176, %s175, 63
      %p178 = scmp.lt.s32.totalorder %s20, 0
      %s179 = scalar_select %p178, %s20, 0
      %s180 = sadd.s32 %s179, %s177
      %s181 = smul.addr %s180, 4
      %s182 = scalar_lea.vmem %s0, %s181
      %p183 = pneg %p50
      %p184 = pneg %p47
      %s185 = smul.u32 16, %s20
      %p186 = scmp.lt.s32.totalorder %s185, 15
      %s187 = scalar_select %p186, %s185, 15
      %s188 = smul.addr %s187, 4
      %s189 = scalar_lea.vmem %s1, %s188
      %p190 = pneg %p76
      %p191 = pneg %p73
      %p192 = pneg %p102
      %p193 = pneg %p99
      %s194 = smul.u32 32, %s19
      %p195 = scmp.lt.s32.totalorder %s194, 63
      %s196 = scalar_select %p195, %s194, 63
      %s197 = smul.addr %s196, 8
      %s198 = scalar_lea.vmem %s2, %s197
      %p199 = pneg %p128
      %p200 = pneg %p125
      %p201 = scmp.lt.s32.totalorder %s19, 1
      %s202 = scalar_select %p201, %s19, 1
      %s203 = smul.addr %s202, 2
      %s204 = scalar_lea.vmem %s3, %s203
      %s205 = smul.u32 32, %s19
      %p206 = scmp.lt.s32.totalorder %s205, 63
      %s207 = scalar_select %p206, %s205, 63
      %p208 = scmp.lt.s32.totalorder %s20, 0
      %s209 = scalar_select %p208, %s20, 0
      %s210 = sadd.s32 %s209, %s207
      %s211 = smul.addr %s210, 4
      %s212 = scalar_lea.vmem %s0, %s211
      %s213 = smul.u32 32, %s19
      %s214 = smul.u32 16, %s20
      %p215 = scmp.lt.s32.totalorder %s214, 15
      %s216 = scalar_select %p215, %s214, 15
      %s217 = smul.addr %s216, 4
      %s218 = scalar_lea.vmem %s1, %s217
      %s219 = smul.u32 16, %s20
      %s220 = smul.u32 32, %s19
      %p221 = scmp.lt.s32.totalorder %s220, 63
      %s222 = scalar_select %p221, %s220, 63
      %s223 = smul.addr %s222, 8
      %s224 = scalar_lea.vmem %s2, %s223
      %s225 = smul.u32 32, %s19
      %p226 = scmp.lt.s32.totalorder %s19, 1
      %s227 = scalar_select %p226, %s19, 1
      %s228 = smul.addr %s227, 2
      %s229 = scalar_lea.vmem %s3, %s228
      %p230 = scmp.eq.s32.totalorder %s20, 0
      // Predicated region
      $region29: #{residual_block_forward.5} parent=27 // pred_check
        %p231 = pneg %p230
      $region30: #{residual_block_forward.5} parent=27 // pred_check_branch
        %233 = sbr.rel (%p231) target = $region32
      $region31: #{residual_block_forward.5} parent=27 // pred_region
        %234 = vst [vmem:[#allocation2] sm:$0xff] 0.0
        %235 = vst [vmem:[#allocation2 + $0x8] sm:$0xff] 0.0
        %236 = vst [vmem:[#allocation2 + $0x10] sm:$0xff] 0.0
        %237 = vst [vmem:[#allocation2 + $0x18] sm:$0xff] 0.0
        %238 = vst [vmem:[#allocation2 + $0x20] sm:$0xff] 0.0
        %239 = vst [vmem:[#allocation2 + $0x28] sm:$0xff] 0.0
        %240 = vst [vmem:[#allocation2 + $0x30] sm:$0xff] 0.0
        %241 = vst [vmem:[#allocation2 + $0x38] sm:$0xff] 0.0
        %242 = vst [vmem:[#allocation2 + $0x40] sm:$0xff] 0.0
        %243 = vst [vmem:[#allocation2 + $0x48] sm:$0xff] 0.0
        %244 = vst [vmem:[#allocation2 + $0x50] sm:$0xff] 0.0
        %245 = vst [vmem:[#allocation2 + $0x58] sm:$0xff] 0.0
        %246 = vst [vmem:[#allocation2 + $0x60] sm:$0xff] 0.0
        %247 = vst [vmem:[#allocation2 + $0x68] sm:$0xff] 0.0
        %248 = vst [vmem:[#allocation2 + $0x70] sm:$0xff] 0.0
        %249 = vst [vmem:[#allocation2 + $0x78] sm:$0xff] 0.0
        %250 = vst [vmem:[#allocation2 + $0x80] sm:$0xff] 0.0
        %251 = vst [vmem:[#allocation2 + $0x88] sm:$0xff] 0.0
        %252 = vst [vmem:[#allocation2 + $0x90] sm:$0xff] 0.0
        %253 = vst [vmem:[#allocation2 + $0x98] sm:$0xff] 0.0
        %254 = vst [vmem:[#allocation2 + $0xa0] sm:$0xff] 0.0
        %255 = vst [vmem:[#allocation2 + $0xa8] sm:$0xff] 0.0
        %256 = vst [vmem:[#allocation2 + $0xb0] sm:$0xff] 0.0
        %257 = vst [vmem:[#allocation2 + $0xb8] sm:$0xff] 0.0
        %258 = vst [vmem:[#allocation2 + $0xc0] sm:$0xff] 0.0
        %259 = vst [vmem:[#allocation2 + $0xc8] sm:$0xff] 0.0
        %260 = vst [vmem:[#allocation2 + $0xd0] sm:$0xff] 0.0
        %261 = vst [vmem:[#allocation2 + $0xd8] sm:$0xff] 0.0
        %262 = vst [vmem:[#allocation2 + $0xe0] sm:$0xff] 0.0
        %263 = vst [vmem:[#allocation2 + $0xe8] sm:$0xff] 0.0
        %264 = vst [vmem:[#allocation2 + $0xf0] sm:$0xff] 0.0
        %265 = vst [vmem:[#allocation2 + $0xf8] sm:$0xff] 0.0
      $region32: #{residual_block_forward.5} parent=27 // pred_fallthru
        _
      %v266 = vld [vmem:[#allocation2] sm:$0xff]
      %v267 = vld [vmem:[#allocation2 + $0x8] sm:$0xff]
      %v268 = vld [vmem:[#allocation2 + $0x10] sm:$0xff]
      %v269 = vld [vmem:[#allocation2 + $0x18] sm:$0xff]
      %v270 = vld [vmem:[#allocation2 + $0x20] sm:$0xff]
      %v271 = vld [vmem:[#allocation2 + $0x28] sm:$0xff]
      %v272 = vld [vmem:[#allocation2 + $0x30] sm:$0xff]
      %v273 = vld [vmem:[#allocation2 + $0x38] sm:$0xff]
      %v274 = vld [vmem:[#allocation2 + $0x40] sm:$0xff]
      %v275 = vld [vmem:[#allocation2 + $0x48] sm:$0xff]
      %v276 = vld [vmem:[#allocation2 + $0x50] sm:$0xff]
      %v277 = vld [vmem:[#allocation2 + $0x58] sm:$0xff]
      %v278 = vld [vmem:[#allocation2 + $0x60] sm:$0xff]
      %v279 = vld [vmem:[#allocation2 + $0x68] sm:$0xff]
      %v280 = vld [vmem:[#allocation2 + $0x70] sm:$0xff]
      %v281 = vld [vmem:[#allocation2 + $0x78] sm:$0xff]
      %v282 = vld [vmem:[#allocation2 + $0x80] sm:$0xff]
      %v283 = vld [vmem:[#allocation2 + $0x88] sm:$0xff]
      %v284 = vld [vmem:[#allocation2 + $0x90] sm:$0xff]
      %v285 = vld [vmem:[#allocation2 + $0x98] sm:$0xff]
      %v286 = vld [vmem:[#allocation2 + $0xa0] sm:$0xff]
      %v287 = vld [vmem:[#allocation2 + $0xa8] sm:$0xff]
      %v288 = vld [vmem:[#allocation2 + $0xb0] sm:$0xff]
      %v289 = vld [vmem:[#allocation2 + $0xb8] sm:$0xff]
      %v290 = vld [vmem:[#allocation2 + $0xc0] sm:$0xff]
      %v291 = vld [vmem:[#allocation2 + $0xc8] sm:$0xff]
      %v292 = vld [vmem:[#allocation2 + $0xd0] sm:$0xff]
      %v293 = vld [vmem:[#allocation2 + $0xd8] sm:$0xff]
      %v294 = vld [vmem:[#allocation2 + $0xe0] sm:$0xff]
      %v295 = vld [vmem:[#allocation2 + $0xe8] sm:$0xff]
      %v296 = vld [vmem:[#allocation2 + $0xf0] sm:$0xff]
      %v297 = vld [vmem:[#allocation2 + $0xf8] sm:$0xff]
      %v298 = vld [vmem:[%s212] sm:$0xf]
      %v299 = vld [vmem:[%s212 + $0x4] sm:$0xf]
      %v300 = vld [vmem:[%s212 + $0x8] sm:$0xf]
      %v301 = vld [vmem:[%s212 + $0xc] sm:$0xf]
      %v302 = vld [vmem:[%s212 + $0x10] sm:$0xf]
      %v303 = vld [vmem:[%s212 + $0x14] sm:$0xf]
      %v304 = vld [vmem:[%s212 + $0x18] sm:$0xf]
      %v305 = vld [vmem:[%s212 + $0x1c] sm:$0xf]
      %v306 = vld [vmem:[%s212 + $0x20] sm:$0xf]
      %v307 = vld [vmem:[%s212 + $0x24] sm:$0xf]
      %v308 = vld [vmem:[%s212 + $0x28] sm:$0xf]
      %v309 = vld [vmem:[%s212 + $0x2c] sm:$0xf]
      %v310 = vld [vmem:[%s212 + $0x30] sm:$0xf]
      %v311 = vld [vmem:[%s212 + $0x34] sm:$0xf]
      %v312 = vld [vmem:[%s212 + $0x38] sm:$0xf]
      %v313 = vld [vmem:[%s212 + $0x3c] sm:$0xf]
      %v314 = vld [vmem:[%s212 + $0x40] sm:$0xf]
      %v315 = vld [vmem:[%s212 + $0x44] sm:$0xf]
      %v316 = vld [vmem:[%s212 + $0x48] sm:$0xf]
      %v317 = vld [vmem:[%s212 + $0x4c] sm:$0xf]
      %v318 = vld [vmem:[%s212 + $0x50] sm:$0xf]
      %v319 = vld [vmem:[%s212 + $0x54] sm:$0xf]
      %v320 = vld [vmem:[%s212 + $0x58] sm:$0xf]
      %v321 = vld [vmem:[%s212 + $0x5c] sm:$0xf]
      %v322 = vld [vmem:[%s212 + $0x60] sm:$0xf]
      %v323 = vld [vmem:[%s212 + $0x64] sm:$0xf]
      %v324 = vld [vmem:[%s212 + $0x68] sm:$0xf]
      %v325 = vld [vmem:[%s212 + $0x6c] sm:$0xf]
      %v326 = vld [vmem:[%s212 + $0x70] sm:$0xf]
      %v327 = vld [vmem:[%s212 + $0x74] sm:$0xf]
      %v328 = vld [vmem:[%s212 + $0x78] sm:$0xf]
      %v329 = vld [vmem:[%s212 + $0x7c] sm:$0xf]
      %v330 = vld [vmem:[%s218] sm:$0xf]
      %v331 = vld [vmem:[%s218 + $0x4] sm:$0xf]
      %v332 = vld [vmem:[%s218 + $0x8] sm:$0xf]
      %v333 = vld [vmem:[%s218 + $0xc] sm:$0xf]
      %v334 = vld [vmem:[%s218 + $0x10] sm:$0xf]
      %v335 = vld [vmem:[%s218 + $0x14] sm:$0xf]
      %v336 = vld [vmem:[%s218 + $0x18] sm:$0xf]
      %v337 = vld [vmem:[%s218 + $0x1c] sm:$0xf]
      %v338 = vld [vmem:[%s218 + $0x20] sm:$0xf]
      %v339 = vld [vmem:[%s218 + $0x24] sm:$0xf]
      %v340 = vld [vmem:[%s218 + $0x28] sm:$0xf]
      %v341 = vld [vmem:[%s218 + $0x2c] sm:$0xf]
      %v342 = vld [vmem:[%s218 + $0x30] sm:$0xf]
      %v343 = vld [vmem:[%s218 + $0x34] sm:$0xf]
      %v344 = vld [vmem:[%s218 + $0x38] sm:$0xf]
      %v345 = vld [vmem:[%s218 + $0x3c] sm:$0xf]
      %v378 = vunpack.c.l.b16 %v298
      %v379 = vunpack.c.l.b16 %v299
      %v380 = vunpack.c.l.b16 %v300
      %v381 = vunpack.c.l.b16 %v301
      %v382 = vunpack.c.l.b16 %v302
      %v383 = vunpack.c.l.b16 %v303
      %v384 = vunpack.c.l.b16 %v304
      %v385 = vunpack.c.l.b16 %v305
      %v386 = vunpack.c.l.b16 %v306
      %v387 = vunpack.c.l.b16 %v307
      %v388 = vunpack.c.l.b16 %v308
      %v389 = vunpack.c.l.b16 %v309
      %v390 = vunpack.c.l.b16 %v310
      %v391 = vunpack.c.l.b16 %v311
      %v392 = vunpack.c.l.b16 %v312
      %v393 = vunpack.c.l.b16 %v313
      %v394 = vunpack.c.l.b16 %v314
      %v395 = vunpack.c.l.b16 %v315
      %v396 = vunpack.c.l.b16 %v316
      %v397 = vunpack.c.l.b16 %v317
      %v398 = vunpack.c.l.b16 %v318
      %v399 = vunpack.c.l.b16 %v319
      %v400 = vunpack.c.l.b16 %v320
      %v401 = vunpack.c.l.b16 %v321
      %v402 = vunpack.c.l.b16 %v322
      %v403 = vunpack.c.l.b16 %v323
      %v404 = vunpack.c.l.b16 %v324
      %v405 = vunpack.c.l.b16 %v325
      %v406 = vunpack.c.l.b16 %v326
      %v407 = vunpack.c.l.b16 %v327
      %v408 = vunpack.c.l.b16 %v328
      %v409 = vunpack.c.l.b16 %v329
      %v410 = vpack.c.b16 %v379, %v378
      %v411 = vpack.c.b16 %v381, %v380
      %v412 = vpack.c.b16 %v383, %v382
      %v413 = vpack.c.b16 %v385, %v384
      %v414 = vpack.c.b16 %v387, %v386
      %v415 = vpack.c.b16 %v389, %v388
      %v416 = vpack.c.b16 %v391, %v390
      %v417 = vpack.c.b16 %v393, %v392
      %v418 = vpack.c.b16 %v395, %v394
      %v419 = vpack.c.b16 %v397, %v396
      %v420 = vpack.c.b16 %v399, %v398
      %v421 = vpack.c.b16 %v401, %v400
      %v422 = vpack.c.b16 %v403, %v402
      %v423 = vpack.c.b16 %v405, %v404
      %v424 = vpack.c.b16 %v407, %v406
      %v425 = vpack.c.b16 %v409, %v408
      %v458 = vunpack.c.l.b16 %v330
      %v459 = vunpack.c.l.b16 %v331
      %v460 = vunpack.c.l.b16 %v332
      %v461 = vunpack.c.l.b16 %v333
      %v462 = vunpack.c.l.b16 %v334
      %v463 = vunpack.c.l.b16 %v335
      %v464 = vunpack.c.l.b16 %v336
      %v465 = vunpack.c.l.b16 %v337
      %v466 = vunpack.c.l.b16 %v338
      %v467 = vunpack.c.l.b16 %v339
      %v468 = vunpack.c.l.b16 %v340
      %v469 = vunpack.c.l.b16 %v341
      %v470 = vunpack.c.l.b16 %v342
      %v471 = vunpack.c.l.b16 %v343
      %v472 = vunpack.c.l.b16 %v344
      %v473 = vunpack.c.l.b16 %v345
      %v474 = vpack.c.b16 %v459, %v458
      %v475 = vpack.c.b16 %v461, %v460
      %v476 = vpack.c.b16 %v463, %v462
      %v477 = vpack.c.b16 %v465, %v464
      %v478 = vpack.c.b16 %v467, %v466
      %v479 = vpack.c.b16 %v469, %v468
      %v480 = vpack.c.b16 %v471, %v470
      %v481 = vpack.c.b16 %v473, %v472
      %490 = vmatpush.bf16.msra.mxu0 %v481
      %491 = vmatpush.bf16.msra.mxu0 %v480
      %492 = vmatpush.bf16.msra.mxu0 %v479
      %493 = vmatpush.bf16.msra.mxu0 %v478
      %494 = vmatpush.bf16.msra.mxu0 %v477
      %495 = vmatpush.bf16.msra.mxu0 %v476
      %496 = vmatpush.bf16.msra.mxu0 %v475
      %497 = vmatpush.bf16.msra.mxu0 %v474
      %498 = vmatmul.bf16.gmra.mxu0 %v410
      %v499 = vpop.f32.mrf.mxu0
      %v500 = vadd.f32 0.0, %v499
      %v501 = vpop.f32.mrf.mxu0
      %v502 = vadd.f32 0.0, %v501
      %503 = vmatmul.bf16.gmra.mxu0 %v411
      %v504 = vpop.f32.mrf.mxu0
      %v505 = vadd.f32 0.0, %v504
      %v506 = vpop.f32.mrf.mxu0
      %v507 = vadd.f32 0.0, %v506
      %508 = vmatmul.bf16.gmra.mxu0 %v412
      %v509 = vpop.f32.mrf.mxu0
      %v510 = vadd.f32 0.0, %v509
      %v511 = vpop.f32.mrf.mxu0
      %v512 = vadd.f32 0.0, %v511
      %513 = vmatmul.bf16.gmra.mxu0 %v413
      %v514 = vpop.f32.mrf.mxu0
      %v515 = vadd.f32 0.0, %v514
      %v516 = vpop.f32.mrf.mxu0
      %v517 = vadd.f32 0.0, %v516
      %518 = vmatmul.bf16.gmra.mxu0 %v414
      %v519 = vpop.f32.mrf.mxu0
      %v520 = vadd.f32 0.0, %v519
      %v521 = vpop.f32.mrf.mxu0
      %v522 = vadd.f32 0.0, %v521
      %523 = vmatmul.bf16.gmra.mxu0 %v415
      %v524 = vpop.f32.mrf.mxu0
      %v525 = vadd.f32 0.0, %v524
      %v526 = vpop.f32.mrf.mxu0
      %v527 = vadd.f32 0.0, %v526
      %528 = vmatmul.bf16.gmra.mxu0 %v416
      %v529 = vpop.f32.mrf.mxu0
      %v530 = vadd.f32 0.0, %v529
      %v531 = vpop.f32.mrf.mxu0
      %v532 = vadd.f32 0.0, %v531
      %533 = vmatmul.bf16.gmra.mxu0 %v417
      %v534 = vpop.f32.mrf.mxu0
      %v535 = vadd.f32 0.0, %v534
      %v536 = vpop.f32.mrf.mxu0
      %v537 = vadd.f32 0.0, %v536
      %538 = vmatmul.bf16.gmra.mxu0 %v418
      %v539 = vpop.f32.mrf.mxu0
      %v540 = vadd.f32 0.0, %v539
      %v541 = vpop.f32.mrf.mxu0
      %v542 = vadd.f32 0.0, %v541
      %543 = vmatmul.bf16.gmra.mxu0 %v419
      %v544 = vpop.f32.mrf.mxu0
      %v545 = vadd.f32 0.0, %v544
      %v546 = vpop.f32.mrf.mxu0
      %v547 = vadd.f32 0.0, %v546
      %548 = vmatmul.bf16.gmra.mxu0 %v420
      %v549 = vpop.f32.mrf.mxu0
      %v550 = vadd.f32 0.0, %v549
      %v551 = vpop.f32.mrf.mxu0
      %v552 = vadd.f32 0.0, %v551
      %553 = vmatmul.bf16.gmra.mxu0 %v421
      %v554 = vpop.f32.mrf.mxu0
      %v555 = vadd.f32 0.0, %v554
      %v556 = vpop.f32.mrf.mxu0
      %v557 = vadd.f32 0.0, %v556
      %558 = vmatmul.bf16.gmra.mxu0 %v422
      %v559 = vpop.f32.mrf.mxu0
      %v560 = vadd.f32 0.0, %v559
      %v561 = vpop.f32.mrf.mxu0
      %v562 = vadd.f32 0.0, %v561
      %563 = vmatmul.bf16.gmra.mxu0 %v423
      %v564 = vpop.f32.mrf.mxu0
      %v565 = vadd.f32 0.0, %v564
      %v566 = vpop.f32.mrf.mxu0
      %v567 = vadd.f32 0.0, %v566
      %568 = vmatmul.bf16.gmra.mxu0 %v424
      %v569 = vpop.f32.mrf.mxu0
      %v570 = vadd.f32 0.0, %v569
      %v571 = vpop.f32.mrf.mxu0
      %v572 = vadd.f32 0.0, %v571
      %573 = vmatmul.bf16.gmra.mxu0 %v425
      %v574 = vpop.f32.mrf.mxu0
      %v575 = vadd.f32 0.0, %v574
      %v576 = vpop.f32.mrf.mxu0
      %v577 = vadd.f32 0.0, %v576
      %578 = vdwg.mxu0
      %v579 = vadd.f32 %v266, %v500
      %v580 = vadd.f32 %v267, %v502
      %v581 = vadd.f32 %v268, %v505
      %v582 = vadd.f32 %v269, %v507
      %v583 = vadd.f32 %v270, %v510
      %v584 = vadd.f32 %v271, %v512
      %v585 = vadd.f32 %v272, %v515
      %v586 = vadd.f32 %v273, %v517
      %v587 = vadd.f32 %v274, %v520
      %v588 = vadd.f32 %v275, %v522
      %v589 = vadd.f32 %v276, %v525
      %v590 = vadd.f32 %v277, %v527
      %v591 = vadd.f32 %v278, %v530
      %v592 = vadd.f32 %v279, %v532
      %v593 = vadd.f32 %v280, %v535
      %v594 = vadd.f32 %v281, %v537
      %v595 = vadd.f32 %v282, %v540
      %v596 = vadd.f32 %v283, %v542
      %v597 = vadd.f32 %v284, %v545
      %v598 = vadd.f32 %v285, %v547
      %v599 = vadd.f32 %v286, %v550
      %v600 = vadd.f32 %v287, %v552
      %v601 = vadd.f32 %v288, %v555
      %v602 = vadd.f32 %v289, %v557
      %v603 = vadd.f32 %v290, %v560
      %v604 = vadd.f32 %v291, %v562
      %v605 = vadd.f32 %v292, %v565
      %v606 = vadd.f32 %v293, %v567
      %v607 = vadd.f32 %v294, %v570
      %v608 = vadd.f32 %v295, %v572
      %v609 = vadd.f32 %v296, %v575
      %v610 = vadd.f32 %v297, %v577
      %611 = vst [vmem:[#allocation2] sm:$0xff] %v579
      %612 = vst [vmem:[#allocation2 + $0x8] sm:$0xff] %v580
      %613 = vst [vmem:[#allocation2 + $0x10] sm:$0xff] %v581
      %614 = vst [vmem:[#allocation2 + $0x18] sm:$0xff] %v582
      %615 = vst [vmem:[#allocation2 + $0x20] sm:$0xff] %v583
      %616 = vst [vmem:[#allocation2 + $0x28] sm:$0xff] %v584
      %617 = vst [vmem:[#allocation2 + $0x30] sm:$0xff] %v585
      %618 = vst [vmem:[#allocation2 + $0x38] sm:$0xff] %v586
      %619 = vst [vmem:[#allocation2 + $0x40] sm:$0xff] %v587
      %620 = vst [vmem:[#allocation2 + $0x48] sm:$0xff] %v588
      %621 = vst [vmem:[#allocation2 + $0x50] sm:$0xff] %v589
      %622 = vst [vmem:[#allocation2 + $0x58] sm:$0xff] %v590
      %623 = vst [vmem:[#allocation2 + $0x60] sm:$0xff] %v591
      %624 = vst [vmem:[#allocation2 + $0x68] sm:$0xff] %v592
      %625 = vst [vmem:[#allocation2 + $0x70] sm:$0xff] %v593
      %626 = vst [vmem:[#allocation2 + $0x78] sm:$0xff] %v594
      %627 = vst [vmem:[#allocation2 + $0x80] sm:$0xff] %v595
      %628 = vst [vmem:[#allocation2 + $0x88] sm:$0xff] %v596
      %629 = vst [vmem:[#allocation2 + $0x90] sm:$0xff] %v597
      %630 = vst [vmem:[#allocation2 + $0x98] sm:$0xff] %v598
      %631 = vst [vmem:[#allocation2 + $0xa0] sm:$0xff] %v599
      %632 = vst [vmem:[#allocation2 + $0xa8] sm:$0xff] %v600
      %633 = vst [vmem:[#allocation2 + $0xb0] sm:$0xff] %v601
      %634 = vst [vmem:[#allocation2 + $0xb8] sm:$0xff] %v602
      %635 = vst [vmem:[#allocation2 + $0xc0] sm:$0xff] %v603
      %636 = vst [vmem:[#allocation2 + $0xc8] sm:$0xff] %v604
      %637 = vst [vmem:[#allocation2 + $0xd0] sm:$0xff] %v605
      %638 = vst [vmem:[#allocation2 + $0xd8] sm:$0xff] %v606
      %639 = vst [vmem:[#allocation2 + $0xe0] sm:$0xff] %v607
      %640 = vst [vmem:[#allocation2 + $0xe8] sm:$0xff] %v608
      %641 = vst [vmem:[#allocation2 + $0xf0] sm:$0xff] %v609
      %642 = vst [vmem:[#allocation2 + $0xf8] sm:$0xff] %v610
      // Predicated region
      $region33: #{residual_block_forward.5} parent=27 // pred_check
        %p643 = pneg %p230
      $region34: #{residual_block_forward.5} parent=27 // pred_check_branch
        %645 = sbr.rel (%p643) target = $region36
      $region35: #{residual_block_forward.5} parent=27 // pred_region
        %v646 = vld [vmem:[#allocation2] sm:$0xff]
        %v647 = vld [vmem:[#allocation2 + $0x8] sm:$0xff]
        %v648 = vld [vmem:[#allocation2 + $0x10] sm:$0xff]
        %v649 = vld [vmem:[#allocation2 + $0x18] sm:$0xff]
        %v650 = vld [vmem:[#allocation2 + $0x20] sm:$0xff]
        %v651 = vld [vmem:[#allocation2 + $0x28] sm:$0xff]
        %v652 = vld [vmem:[#allocation2 + $0x30] sm:$0xff]
        %v653 = vld [vmem:[#allocation2 + $0x38] sm:$0xff]
        %v654 = vld [vmem:[#allocation2 + $0x40] sm:$0xff]
        %v655 = vld [vmem:[#allocation2 + $0x48] sm:$0xff]
        %v656 = vld [vmem:[#allocation2 + $0x50] sm:$0xff]
        %v657 = vld [vmem:[#allocation2 + $0x58] sm:$0xff]
        %v658 = vld [vmem:[#allocation2 + $0x60] sm:$0xff]
        %v659 = vld [vmem:[#allocation2 + $0x68] sm:$0xff]
        %v660 = vld [vmem:[#allocation2 + $0x70] sm:$0xff]
        %v661 = vld [vmem:[#allocation2 + $0x78] sm:$0xff]
        %v662 = vld [vmem:[#allocation2 + $0x80] sm:$0xff]
        %v663 = vld [vmem:[#allocation2 + $0x88] sm:$0xff]
        %v664 = vld [vmem:[#allocation2 + $0x90] sm:$0xff]
        %v665 = vld [vmem:[#allocation2 + $0x98] sm:$0xff]
        %v666 = vld [vmem:[#allocation2 + $0xa0] sm:$0xff]
        %v667 = vld [vmem:[#allocation2 + $0xa8] sm:$0xff]
        %v668 = vld [vmem:[#allocation2 + $0xb0] sm:$0xff]
        %v669 = vld [vmem:[#allocation2 + $0xb8] sm:$0xff]
        %v670 = vld [vmem:[#allocation2 + $0xc0] sm:$0xff]
        %v671 = vld [vmem:[#allocation2 + $0xc8] sm:$0xff]
        %v672 = vld [vmem:[#allocation2 + $0xd0] sm:$0xff]
        %v673 = vld [vmem:[#allocation2 + $0xd8] sm:$0xff]
        %v674 = vld [vmem:[#allocation2 + $0xe0] sm:$0xff]
        %v675 = vld [vmem:[#allocation2 + $0xe8] sm:$0xff]
        %v676 = vld [vmem:[#allocation2 + $0xf0] sm:$0xff]
        %v677 = vld [vmem:[#allocation2 + $0xf8] sm:$0xff]
        %678 = vst [vmem:[%s224] sm:$0xff] %v646
        %679 = vst [vmem:[%s224 + $0x8] sm:$0xff] %v647
        %680 = vst [vmem:[%s224 + $0x10] sm:$0xff] %v648
        %681 = vst [vmem:[%s224 + $0x18] sm:$0xff] %v649
        %682 = vst [vmem:[%s224 + $0x20] sm:$0xff] %v650
        %683 = vst [vmem:[%s224 + $0x28] sm:$0xff] %v651
        %684 = vst [vmem:[%s224 + $0x30] sm:$0xff] %v652
        %685 = vst [vmem:[%s224 + $0x38] sm:$0xff] %v653
        %686 = vst [vmem:[%s224 + $0x40] sm:$0xff] %v654
        %687 = vst [vmem:[%s224 + $0x48] sm:$0xff] %v655
        %688 = vst [vmem:[%s224 + $0x50] sm:$0xff] %v656
        %689 = vst [vmem:[%s224 + $0x58] sm:$0xff] %v657
        %690 = vst [vmem:[%s224 + $0x60] sm:$0xff] %v658
        %691 = vst [vmem:[%s224 + $0x68] sm:$0xff] %v659
        %692 = vst [vmem:[%s224 + $0x70] sm:$0xff] %v660
        %693 = vst [vmem:[%s224 + $0x78] sm:$0xff] %v661
        %694 = vst [vmem:[%s224 + $0x80] sm:$0xff] %v662
        %695 = vst [vmem:[%s224 + $0x88] sm:$0xff] %v663
        %696 = vst [vmem:[%s224 + $0x90] sm:$0xff] %v664
        %697 = vst [vmem:[%s224 + $0x98] sm:$0xff] %v665
        %698 = vst [vmem:[%s224 + $0xa0] sm:$0xff] %v666
        %699 = vst [vmem:[%s224 + $0xa8] sm:$0xff] %v667
        %700 = vst [vmem:[%s224 + $0xb0] sm:$0xff] %v668
        %701 = vst [vmem:[%s224 + $0xb8] sm:$0xff] %v669
        %702 = vst [vmem:[%s224 + $0xc0] sm:$0xff] %v670
        %703 = vst [vmem:[%s224 + $0xc8] sm:$0xff] %v671
        %704 = vst [vmem:[%s224 + $0xd0] sm:$0xff] %v672
        %705 = vst [vmem:[%s224 + $0xd8] sm:$0xff] %v673
        %706 = vst [vmem:[%s224 + $0xe0] sm:$0xff] %v674
        %707 = vst [vmem:[%s224 + $0xe8] sm:$0xff] %v675
        %708 = vst [vmem:[%s224 + $0xf0] sm:$0xff] %v676
        %709 = vst [vmem:[%s224 + $0xf8] sm:$0xff] %v677
        %v710 = vadd.f32 %v646, %v647
        %v711 = vadd.f32 %v710, %v648
        %v712 = vadd.f32 %v711, %v649
        %v713 = vadd.f32 %v712, %v650
        %v714 = vadd.f32 %v713, %v651
        %v715 = vadd.f32 %v714, %v652
        %v716 = vadd.f32 %v715, %v653
        %v717 = vadd.f32 %v716, %v654
        %v718 = vadd.f32 %v717, %v655
        %v719 = vadd.f32 %v718, %v656
        %v720 = vadd.f32 %v719, %v657
        %v721 = vadd.f32 %v720, %v658
        %v722 = vadd.f32 %v721, %v659
        %v723 = vadd.f32 %v722, %v660
        %v724 = vadd.f32 %v723, %v661
        %v725 = vadd.f32 %v724, %v662
        %v726 = vadd.f32 %v725, %v663
        %v727 = vadd.f32 %v726, %v664
        %v728 = vadd.f32 %v727, %v665
        %v729 = vadd.f32 %v728, %v666
        %v730 = vadd.f32 %v729, %v667
        %v731 = vadd.f32 %v730, %v668
        %v732 = vadd.f32 %v731, %v669
        %v733 = vadd.f32 %v732, %v670
        %v734 = vadd.f32 %v733, %v671
        %v735 = vadd.f32 %v734, %v672
        %v736 = vadd.f32 %v735, %v673
        %v737 = vadd.f32 %v736, %v674
        %v738 = vadd.f32 %v737, %v675
        %v739 = vadd.f32 %v738, %v676
        %v740 = vadd.f32 %v739, %v677
        %v741 = vrot.slane %v740, 4
        %v742 = vadd.f32 %v740, %v741
        %v743 = vrot.slane %v742, 2
        %v744 = vadd.f32 %v742, %v743
        %v745 = vrot.slane %v744, 1
        %v746 = vadd.f32 %v744, %v745
        %v747 = vmul.f32 %v646, %v646
        %v748 = vmul.f32 %v647, %v647
        %v749 = vmul.f32 %v648, %v648
        %v750 = vmul.f32 %v649, %v649
        %v751 = vmul.f32 %v650, %v650
        %v752 = vmul.f32 %v651, %v651
        %v753 = vmul.f32 %v652, %v652
        %v754 = vmul.f32 %v653, %v653
        %v755 = vmul.f32 %v654, %v654
        %v756 = vmul.f32 %v655, %v655
        %v757 = vmul.f32 %v656, %v656
        %v758 = vmul.f32 %v657, %v657
        %v759 = vmul.f32 %v658, %v658
        %v760 = vmul.f32 %v659, %v659
        %v761 = vmul.f32 %v660, %v660
        %v762 = vmul.f32 %v661, %v661
        %v763 = vmul.f32 %v662, %v662
        %v764 = vmul.f32 %v663, %v663
        %v765 = vmul.f32 %v664, %v664
        %v766 = vmul.f32 %v665, %v665
        %v767 = vmul.f32 %v666, %v666
        %v768 = vmul.f32 %v667, %v667
        %v769 = vmul.f32 %v668, %v668
        %v770 = vmul.f32 %v669, %v669
        %v771 = vmul.f32 %v670, %v670
        %v772 = vmul.f32 %v671, %v671
        %v773 = vmul.f32 %v672, %v672
        %v774 = vmul.f32 %v673, %v673
        %v775 = vmul.f32 %v674, %v674
        %v776 = vmul.f32 %v675, %v675
        %v777 = vmul.f32 %v676, %v676
        %v778 = vmul.f32 %v677, %v677
        %v779 = vadd.f32 %v747, %v748
        %v780 = vadd.f32 %v779, %v749
        %v781 = vadd.f32 %v780, %v750
        %v782 = vadd.f32 %v781, %v751
        %v783 = vadd.f32 %v782, %v752
        %v784 = vadd.f32 %v783, %v753
        %v785 = vadd.f32 %v784, %v754
        %v786 = vadd.f32 %v785, %v755
        %v787 = vadd.f32 %v786, %v756
        %v788 = vadd.f32 %v787, %v757
        %v789 = vadd.f32 %v788, %v758
        %v790 = vadd.f32 %v789, %v759
        %v791 = vadd.f32 %v790, %v760
        %v792 = vadd.f32 %v791, %v761
        %v793 = vadd.f32 %v792, %v762
        %v794 = vadd.f32 %v793, %v763
        %v795 = vadd.f32 %v794, %v764
        %v796 = vadd.f32 %v795, %v765
        %v797 = vadd.f32 %v796, %v766
        %v798 = vadd.f32 %v797, %v767
        %v799 = vadd.f32 %v798, %v768
        %v800 = vadd.f32 %v799, %v769
        %v801 = vadd.f32 %v800, %v770
        %v802 = vadd.f32 %v801, %v771
        %v803 = vadd.f32 %v802, %v772
        %v804 = vadd.f32 %v803, %v773
        %v805 = vadd.f32 %v804, %v774
        %v806 = vadd.f32 %v805, %v775
        %v807 = vadd.f32 %v806, %v776
        %v808 = vadd.f32 %v807, %v777
        %v809 = vadd.f32 %v808, %v778
        %v810 = vrot.slane %v809, 4
        %v811 = vadd.f32 %v809, %v810
        %v812 = vrot.slane %v811, 2
        %v813 = vadd.f32 %v811, %v812
        %v814 = vrot.slane %v813, 1
        %v815 = vadd.f32 %v813, %v814
        %vm816 = vcmask 1040384
        %v817 = vsel %vm816, %v746, %v815
        %818 = vst [vmem:[%s229] sm:$0x3] %v817
      $region36: #{residual_block_forward.5} parent=27 // pred_fallthru
        _
      %s819 = smul.u32 32, %s19
      %p820 = scmp.lt.s32.totalorder %s819, 63
      %s821 = scalar_select %p820, %s819, 63
      %s822 = smul.addr %s821, 8
      %s823 = scalar_lea.vmem %s2, %s822
      %p824 = scmp.lt.s32.totalorder %s19, 1
      %s825 = scalar_select %p824, %s19, 1
      %s826 = smul.addr %s825, 2
      %s827 = scalar_lea.vmem %s3, %s826
      // Predicated region
      $region37: #{residual_block_forward.5} parent=27 // pred_check
        %p828 = pneg %p99
      $region38: #{residual_block_forward.5} parent=27 // pred_check_branch
        %830 = sbr.rel (%p828) target = $region40
      $region39: #{residual_block_forward.5} parent=27 // pred_region
        %s831 = smul.u32 32, %s19
      $region40: #{residual_block_forward.5} parent=27 // pred_fallthru
        _
      // Predicated region
      $region41: #{residual_block_forward.5} parent=27 // pred_check
        %p832 = pneg %p125
      $region42: #{residual_block_forward.5} parent=27 // pred_check_branch
        %834 = sbr.rel (%p832) target = $region44
      $region43: #{residual_block_forward.5} parent=27 // pred_region
        _
      $region44: #{residual_block_forward.5} parent=27 // pred_fallthru
        _
    $region28: #{residual_block_forward.5} parent=5 // pred_fallthru
      _
    %p835 = scmp.le.s32.totalorder 2, %s10
    // Predicated region
    $region45: #{residual_block_forward.5} parent=5 // pred_check
      %p836 = pneg %p835
    $region46: #{residual_block_forward.5} parent=5 // pred_check_branch
      %838 = sbr.rel (%p836) target = $region48
    $region47: #{residual_block_forward.5} parent=5 // pred_region
      %s839 = ssub.s32 %s10, 2
      // Predicated region
      $region49: #{residual_block_forward.5} parent=47 // pred_check
        %p840 = pneg %p105
      $region50: #{residual_block_forward.5} parent=47 // pred_check_branch
        %842 = sbr.rel (%p840) target = $region52
      $region51: #{residual_block_forward.5} parent=47 // pred_region
        %s843 = smul.u32 32, %s21
        %p844 = scmp.lt.s32.totalorder %s843, 63
        %s845 = scalar_select %p844, %s843, 63
        %s846 = smul.addr %s845, 8
        %s847 = scalar_lea.vmem %s2, %s846
      $region52: #{residual_block_forward.5} parent=47 // pred_fallthru
        _
      // Predicated region
      $region53: #{residual_block_forward.5} parent=47 // pred_check
        %p848 = pneg %p131
      $region54: #{residual_block_forward.5} parent=47 // pred_check_branch
        %850 = sbr.rel (%p848) target = $region56
      $region55: #{residual_block_forward.5} parent=47 // pred_region
        %p851 = scmp.lt.s32.totalorder %s21, 1
        %s852 = scalar_select %p851, %s21, 1
        %s853 = smul.addr %s852, 2
        %s854 = scalar_lea.vmem %s3, %s853
      $region56: #{residual_block_forward.5} parent=47 // pred_fallthru
        _
    $region48: #{residual_block_forward.5} parent=5 // pred_fallthru
      _
  $region6: #{residual_block_forward.5} parent=0 // loop_footer
    %s14 = sadd.s32 1, %s10
  $region7: #{residual_block_forward.5} parent=0 // loop_footer_branch
    %9 = sbr.rel target = $region3
  $region8: #{residual_block_forward.5} parent=0 // loop_exit
    _

// kernel: residual_block_forward.9
$region0: #{residual_block_forward.9}
  #allocation0 [shape = 'u32[]', space=smem, size = 0x4, offset = 0x4, fixed_abs, tag = 'smem constant byte address 0x4 - core index']
  #allocation1 [shape = 'u32[72,128]{1,0:T(1,128)}', space=vmem, size = 0x9000, scoped, tag = 'internal scratch']
  %s0 = inlined_call_operand.vmem [shape: f32[512,128], index: 0, kind: input, shape index: {}]
  %s1 = inlined_call_operand.vmem [shape: f32[1,128], index: 1, kind: input, shape index: {}]
  %s2 = inlined_call_operand.vmem [shape: f32[1,128], index: 2, kind: input, shape index: {}]
  %s3 = inlined_call_operand.vmem [shape: f32[512,128], index: 3, kind: input, shape index: {}]
  %s4 = inlined_call_operand.vmem [shape: f32[1,128], index: 4, kind: input, shape index: {}]
  %s5 = inlined_call_operand.vmem [shape: f32[1,128], index: 5, kind: input, shape index: {}]
  %s6 = inlined_call_operand.vmem [shape: f32[512,128], index: 6, kind: output, shape index: {}]
  %s7 = sld [smem:[#allocation0]]
  $region57: #{residual_block_forward.9} parent=0
    _
  %s9 = ssub.s32 1, %s7
  %s10 = scalar_select 0, %s9, %s7
  loop: start=0, step=1, limit=4
  $region2: #{residual_block_forward.9} parent=0 // loop_pre_header
    _
  $region3: #{residual_block_forward.9} parent=0 // loop_header
    %s12 = sphi 0, %s16
    %p13 = scmp.ge.s32.totalorder %s12, 4
    %s22 = sphi 0, %s24
    %s25 = sphi 0, %s22
    %s26 = sphi 0, %s25
    %s42 = sphi 0, %s26
    %s46 = sphi 0, %s46
    %s48 = sphi 0, %s46
    %s49 = sphi 0, %s48
    %s63 = sphi 0, %s49
    %s67 = sphi 0, %s67
    %s69 = sphi 0, %s67
    %s70 = sphi 0, %s69
    %s84 = sphi 0, %s70
    %s90 = sphi 0, %s92
    %s93 = sphi 0, %s90
    %s94 = sphi 0, %s93
    %s110 = sphi 0, %s94
    %s114 = sphi 0, %s114
    %s116 = sphi 0, %s114
    %s117 = sphi 0, %s116
    %s131 = sphi 0, %s117
    %s135 = sphi 0, %s135
    %s137 = sphi 0, %s135
    %s138 = sphi 0, %s137
    %s152 = sphi 0, %s138
    %s158 = sphi 0, %s160
    %s161 = sphi 0, %s158
    %s162 = sphi 0, %s161
    %s178 = sphi 0, %s162
  $region4: #{residual_block_forward.9} parent=0 // loop_header_branch
    %15 = sbr.rel (%p13) target = $region8
  $region5: #{residual_block_forward.9} parent=0 // loop_body
    %s17 = ssub.s32 %s12, 1
    %s18 = ssub.s32 %s12, 2
    %s19 = sadd.s32 %s12, 1
    %s20 = ssub.s32 %s12, %s19
    %p21 = scmp.eq.s32.totalorder %s20, 0
    %s23 = sadd.s32 %s22, 1
    %s24 = scalar_select %p21, %s22, %s23
    %p27 = pneg %p21
    %p28 = scmp.eq.s32.totalorder %s12, 1
    %p29 = por %p27, %p28
    %p30 = scmp.ne.s32.totalorder %s22, %s25
    %p31 = scmp.eq.s32.totalorder %s12, 0
    %p32 = por %p30, %p31
    %p33 = scmp.ne.s32.totalorder %s22, %s25
    %p34 = scmp.eq.s32.totalorder %s17, 1
    %p35 = por %p33, %p34
    %p36 = scmp.ne.s32.totalorder %s25, %s26
    %p37 = scmp.eq.s32.totalorder %s17, 0
    %p38 = por %p36, %p37
    %p39 = scmp.ne.s32.totalorder %s25, %s26
    %p40 = scmp.eq.s32.totalorder %s18, 1
    %p41 = por %p39, %p40
    %p43 = scmp.ne.s32.totalorder %s26, %s42
    %p44 = scmp.eq.s32.totalorder %s18, 0
    %p45 = por %p43, %p44
    %s47 = sadd.s32 %s46, 1
    %p50 = scmp.eq.s32.totalorder %s12, 1
    %p51 = scmp.ne.s32.totalorder %s46, %s48
    %p52 = scmp.eq.s32.totalorder %s12, 0
    %p53 = por %p51, %p52
    %p54 = scmp.ne.s32.totalorder %s46, %s48
    %p55 = scmp.eq.s32.totalorder %s17, 1
    %p56 = por %p54, %p55
    %p57 = scmp.ne.s32.totalorder %s48, %s49
    %p58 = scmp.eq.s32.totalorder %s17, 0
    %p59 = por %p57, %p58
    %p60 = scmp.ne.s32.totalorder %s48, %s49
    %p61 = scmp.eq.s32.totalorder %s18, 1
    %p62 = por %p60, %p61
    %p64 = scmp.ne.s32.totalorder %s49, %s63
    %p65 = scmp.eq.s32.totalorder %s18, 0
    %p66 = por %p64, %p65
    %s68 = sadd.s32 %s67, 1
    %p71 = scmp.eq.s32.totalorder %s12, 1
    %p72 = scmp.ne.s32.totalorder %s67, %s69
    %p73 = scmp.eq.s32.totalorder %s12, 0
    %p74 = por %p72, %p73
    %p75 = scmp.ne.s32.totalorder %s67, %s69
    %p76 = scmp.eq.s32.totalorder %s17, 1
    %p77 = por %p75, %p76
    %p78 = scmp.ne.s32.totalorder %s69, %s70
    %p79 = scmp.eq.s32.totalorder %s17, 0
    %p80 = por %p78, %p79
    %p81 = scmp.ne.s32.totalorder %s69, %s70
    %p82 = scmp.eq.s32.totalorder %s18, 1
    %p83 = por %p81, %p82
    %p85 = scmp.ne.s32.totalorder %s70, %s84
    %p86 = scmp.eq.s32.totalorder %s18, 0
    %p87 = por %p85, %p86
    %s88 = ssub.s32 %s12, %s19
    %p89 = scmp.eq.s32.totalorder %s88, 0
    %s91 = sadd.s32 %s90, 1
    %s92 = scalar_select %p89, %s90, %s91
    %p95 = pneg %p89
    %p96 = scmp.eq.s32.totalorder %s12, 1
    %p97 = por %p95, %p96
    %p98 = scmp.ne.s32.totalorder %s90, %s93
    %p99 = scmp.eq.s32.totalorder %s12, 0
    %p100 = por %p98, %p99
    %p101 = scmp.ne.s32.totalorder %s90, %s93
    %p102 = scmp.eq.s32.totalorder %s17, 1
    %p103 = por %p101, %p102
    %p104 = scmp.ne.s32.totalorder %s93, %s94
    %p105 = scmp.eq.s32.totalorder %s17, 0
    %p106 = por %p104, %p105
    %p107 = scmp.ne.s32.totalorder %s93, %s94
    %p108 = scmp.eq.s32.totalorder %s18, 1
    %p109 = por %p107, %p108
    %p111 = scmp.ne.s32.totalorder %s94, %s110
    %p112 = scmp.eq.s32.totalorder %s18, 0
    %p113 = por %p111, %p112
    %s115 = sadd.s32 %s114, 1
    %p118 = scmp.eq.s32.totalorder %s12, 1
    %p119 = scmp.ne.s32.totalorder %s114, %s116
    %p120 = scmp.eq.s32.totalorder %s12, 0
    %p121 = por %p119, %p120
    %p122 = scmp.ne.s32.totalorder %s114, %s116
    %p123 = scmp.eq.s32.totalorder %s17, 1
    %p124 = por %p122, %p123
    %p125 = scmp.ne.s32.totalorder %s116, %s117
    %p126 = scmp.eq.s32.totalorder %s17, 0
    %p127 = por %p125, %p126
    %p128 = scmp.ne.s32.totalorder %s116, %s117
    %p129 = scmp.eq.s32.totalorder %s18, 1
    %p130 = por %p128, %p129
    %p132 = scmp.ne.s32.totalorder %s117, %s131
    %p133 = scmp.eq.s32.totalorder %s18, 0
    %p134 = por %p132, %p133
    %s136 = sadd.s32 %s135, 1
    %p139 = scmp.eq.s32.totalorder %s12, 1
    %p140 = scmp.ne.s32.totalorder %s135, %s137
    %p141 = scmp.eq.s32.totalorder %s12, 0
    %p142 = por %p140, %p141
    %p143 = scmp.ne.s32.totalorder %s135, %s137
    %p144 = scmp.eq.s32.totalorder %s17, 1
    %p145 = por %p143, %p144
    %p146 = scmp.ne.s32.totalorder %s137, %s138
    %p147 = scmp.eq.s32.totalorder %s17, 0
    %p148 = por %p146, %p147
    %p149 = scmp.ne.s32.totalorder %s137, %s138
    %p150 = scmp.eq.s32.totalorder %s18, 1
    %p151 = por %p149, %p150
    %p153 = scmp.ne.s32.totalorder %s138, %s152
    %p154 = scmp.eq.s32.totalorder %s18, 0
    %p155 = por %p153, %p154
    %s156 = ssub.s32 %s12, %s19
    %p157 = scmp.eq.s32.totalorder %s156, 0
    %s159 = sadd.s32 %s158, 1
    %s160 = scalar_select %p157, %s158, %s159
    %p163 = pneg %p157
    %p164 = scmp.eq.s32.totalorder %s12, 1
    %p165 = por %p163, %p164
    %p166 = scmp.ne.s32.totalorder %s158, %s161
    %p167 = scmp.eq.s32.totalorder %s12, 0
    %p168 = por %p166, %p167
    %p169 = scmp.ne.s32.totalorder %s158, %s161
    %p170 = scmp.eq.s32.totalorder %s17, 1
    %p171 = por %p169, %p170
    %p172 = scmp.ne.s32.totalorder %s161, %s162
    %p173 = scmp.eq.s32.totalorder %s17, 0
    %p174 = por %p172, %p173
    %p175 = scmp.ne.s32.totalorder %s161, %s162
    %p176 = scmp.eq.s32.totalorder %s18, 1
    %p177 = por %p175, %p176
    %p179 = scmp.ne.s32.totalorder %s162, %s178
    %p180 = scmp.eq.s32.totalorder %s18, 0
    %p181 = por %p179, %p180
    %p182 = scmp.le.s32.totalorder 1, %s12
    %p183 = scmp.lt.s32.totalorder %s12, 3
    %p184 = pnand %p182, %p183
    %p185 = pneg %p184
    // Predicated region
    $region9: #{residual_block_forward.9} parent=5 // pred_check
      _
    $region10: #{residual_block_forward.9} parent=5 // pred_check_branch
      %187 = sbr.rel (%p184) target = $region12
    $region11: #{residual_block_forward.9} parent=5 // pred_region
      %s188 = ssub.s32 %s12, 1
      // Predicated region
      $region13: #{residual_block_forward.9} parent=11 // pred_check
        %p189 = pneg %p59
      $region14: #{residual_block_forward.9} parent=11 // pred_check_branch
        %191 = sbr.rel (%p189) target = $region16
      $region15: #{residual_block_forward.9} parent=11 // pred_region
        _
      $region16: #{residual_block_forward.9} parent=11 // pred_fallthru
        _
      // Predicated region
      $region17: #{residual_block_forward.9} parent=11 // pred_check
        %p192 = pneg %p80
      $region18: #{residual_block_forward.9} parent=11 // pred_check_branch
        %194 = sbr.rel (%p192) target = $region20
      $region19: #{residual_block_forward.9} parent=11 // pred_region
        _
      $region20: #{residual_block_forward.9} parent=11 // pred_fallthru
        _
      // Predicated region
      $region21: #{residual_block_forward.9} parent=11 // pred_check
        %p195 = pneg %p127
      $region22: #{residual_block_forward.9} parent=11 // pred_check_branch
        %197 = sbr.rel (%p195) target = $region24
      $region23: #{residual_block_forward.9} parent=11 // pred_region
        _
      $region24: #{residual_block_forward.9} parent=11 // pred_fallthru
        _
      // Predicated region
      $region25: #{residual_block_forward.9} parent=11 // pred_check
        %p198 = pneg %p148
      $region26: #{residual_block_forward.9} parent=11 // pred_check_branch
        %200 = sbr.rel (%p198) target = $region28
      $region27: #{residual_block_forward.9} parent=11 // pred_region
        _
      $region28: #{residual_block_forward.9} parent=11 // pred_fallthru
        _
    $region12: #{residual_block_forward.9} parent=5 // pred_fallthru
      _
    %p201 = scmp.lt.s32.totalorder %s12, 2
    // Predicated region
    $region29: #{residual_block_forward.9} parent=5 // pred_check
      %p202 = pneg %p201
    $region30: #{residual_block_forward.9} parent=5 // pred_check_branch
      %204 = sbr.rel (%p202) target = $region32
    $region31: #{residual_block_forward.9} parent=5 // pred_region
      // Predicated region
      $region33: #{residual_block_forward.9} parent=31 // pred_check
        %p205 = pneg %p32
      $region34: #{residual_block_forward.9} parent=31 // pred_check_branch
        %207 = sbr.rel (%p205) target = $region36
      $region35: #{residual_block_forward.9} parent=31 // pred_region
        %s208 = smul.u32 32, %s12
        %p209 = scmp.lt.s32.totalorder %s208, 63
        %s210 = scalar_select %p209, %s208, 63
        %s211 = smul.addr %s210, 8
        %s212 = scalar_lea.vmem %s0, %s211
        %s213 = smul.u32 32, %s12
      $region36: #{residual_block_forward.9} parent=31 // pred_fallthru
        _
      // Predicated region
      $region37: #{residual_block_forward.9} parent=31 // pred_check
        %p214 = pneg %p100
      $region38: #{residual_block_forward.9} parent=31 // pred_check_branch
        %216 = sbr.rel (%p214) target = $region40
      $region39: #{residual_block_forward.9} parent=31 // pred_region
        %s217 = smul.u32 32, %s12
        %p218 = scmp.lt.s32.totalorder %s217, 63
        %s219 = scalar_select %p218, %s217, 63
        %s220 = smul.addr %s219, 8
        %s221 = scalar_lea.vmem %s3, %s220
        %s222 = smul.u32 32, %s12
      $region40: #{residual_block_forward.9} parent=31 // pred_fallthru
        _
    $region32: #{residual_block_forward.9} parent=5 // pred_fallthru
      _
    %p223 = scmp.le.s32.totalorder 1, %s12
    %p224 = scmp.lt.s32.totalorder %s12, 3
    %p225 = pnand %p223, %p224
    %p226 = pneg %p225
    // Predicated region
    $region41: #{residual_block_forward.9} parent=5 // pred_check
      _
    $region42: #{residual_block_forward.9} parent=5 // pred_check_branch
      %228 = sbr.rel (%p225) target = $region44
    $region43: #{residual_block_forward.9} parent=5 // pred_region
      %s229 = ssub.s32 %s12, 1
      %s230 = smul.u32 32, %s17
      %p231 = scmp.lt.s32.totalorder %s230, 63
      %s232 = scalar_select %p231, %s230, 63
      %s233 = smul.addr %s232, 8
      %s234 = scalar_lea.vmem %s0, %s233
      %p235 = pneg %p38
      %p236 = pneg %p35
      %p237 = pneg %p59
      %p238 = pneg %p56
      %p239 = pneg %p80
      %p240 = pneg %p77
      %s241 = smul.u32 32, %s17
      %p242 = scmp.lt.s32.totalorder %s241, 63
      %s243 = scalar_select %p242, %s241, 63
      %s244 = smul.addr %s243, 8
      %s245 = scalar_lea.vmem %s3, %s244
      %p246 = pneg %p106
      %p247 = pneg %p103
      %p248 = pneg %p127
      %p249 = pneg %p124
      %p250 = pneg %p148
      %p251 = pneg %p145
      %p252 = pneg %p174
      %p253 = pneg %p171
      %s254 = smul.u32 32, %s17
      %p255 = scmp.lt.s32.totalorder %s254, 63
      %s256 = scalar_select %p255, %s254, 63
      %s257 = smul.addr %s256, 8
      %s258 = scalar_lea.vmem %s6, %s257
      %s259 = smul.u32 32, %s17
      %p260 = scmp.lt.s32.totalorder %s259, 63
      %s261 = scalar_select %p260, %s259, 63
      %s262 = smul.addr %s261, 8
      %s263 = scalar_lea.vmem %s0, %s262
      %s264 = smul.u32 32, %s17
      %s265 = smul.u32 32, %s17
      %p266 = scmp.lt.s32.totalorder %s265, 63
      %s267 = scalar_select %p266, %s265, 63
      %s268 = smul.addr %s267, 8
      %s269 = scalar_lea.vmem %s3, %s268
      %s270 = smul.u32 32, %s17
      %s271 = smul.u32 32, %s17
      %p272 = scmp.lt.s32.totalorder %s271, 63
      %s273 = scalar_select %p272, %s271, 63
      %s274 = smul.addr %s273, 8
      %s275 = scalar_lea.vmem %s6, %s274
      %s276 = smul.u32 32, %s17
      %v277 = vld [vmem:[%s263] sm:$0xff]
      %v278 = vld [vmem:[%s263 + $0x8] sm:$0xff]
      %v279 = vld [vmem:[%s263 + $0x10] sm:$0xff]
      %v280 = vld [vmem:[%s263 + $0x18] sm:$0xff]
      %v281 = vld [vmem:[%s263 + $0x20] sm:$0xff]
      %v282 = vld [vmem:[%s263 + $0x28] sm:$0xff]
      %v283 = vld [vmem:[%s263 + $0x30] sm:$0xff]
      %v284 = vld [vmem:[%s263 + $0x38] sm:$0xff]
      %v285 = vld [vmem:[%s263 + $0x40] sm:$0xff]
      %v286 = vld [vmem:[%s263 + $0x48] sm:$0xff]
      %v287 = vld [vmem:[%s263 + $0x50] sm:$0xff]
      %v288 = vld [vmem:[%s263 + $0x58] sm:$0xff]
      %v289 = vld [vmem:[%s263 + $0x60] sm:$0xff]
      %v290 = vld [vmem:[%s263 + $0x68] sm:$0xff]
      %v291 = vld [vmem:[%s263 + $0x70] sm:$0xff]
      %v292 = vld [vmem:[%s263 + $0x78] sm:$0xff]
      %v293 = vld [vmem:[%s263 + $0x80] sm:$0xff]
      %v294 = vld [vmem:[%s263 + $0x88] sm:$0xff]
      %v295 = vld [vmem:[%s263 + $0x90] sm:$0xff]
      %v296 = vld [vmem:[%s263 + $0x98] sm:$0xff]
      %v297 = vld [vmem:[%s263 + $0xa0] sm:$0xff]
      %v298 = vld [vmem:[%s263 + $0xa8] sm:$0xff]
      %v299 = vld [vmem:[%s263 + $0xb0] sm:$0xff]
      %v300 = vld [vmem:[%s263 + $0xb8] sm:$0xff]
      %v301 = vld [vmem:[%s263 + $0xc0] sm:$0xff]
      %v302 = vld [vmem:[%s263 + $0xc8] sm:$0xff]
      %v303 = vld [vmem:[%s263 + $0xd0] sm:$0xff]
      %v304 = vld [vmem:[%s263 + $0xd8] sm:$0xff]
      %v305 = vld [vmem:[%s263 + $0xe0] sm:$0xff]
      %v306 = vld [vmem:[%s263 + $0xe8] sm:$0xff]
      %v307 = vld [vmem:[%s263 + $0xf0] sm:$0xff]
      %v308 = vld [vmem:[%s263 + $0xf8] sm:$0xff]
      %v309 = vld [vmem:[%s1] sm:$0x1]
      %v311 = vperm.slane %v309, 0
      %v313 = vmul.f32 %v277, %v311
      %v314 = vmul.f32 %v278, %v311
      %v315 = vmul.f32 %v279, %v311
      %v316 = vmul.f32 %v280, %v311
      %v317 = vmul.f32 %v281, %v311
      %v318 = vmul.f32 %v282, %v311
      %v319 = vmul.f32 %v283, %v311
      %v320 = vmul.f32 %v284, %v311
      %v321 = vmul.f32 %v285, %v311
      %v322 = vmul.f32 %v286, %v311
      %v323 = vmul.f32 %v287, %v311
      %v324 = vmul.f32 %v288, %v311
      %v325 = vmul.f32 %v289, %v311
      %v326 = vmul.f32 %v290, %v311
      %v327 = vmul.f32 %v291, %v311
      %v328 = vmul.f32 %v292, %v311
      %v329 = vmul.f32 %v293, %v311
      %v330 = vmul.f32 %v294, %v311
      %v331 = vmul.f32 %v295, %v311
      %v332 = vmul.f32 %v296, %v311
      %v333 = vmul.f32 %v297, %v311
      %v334 = vmul.f32 %v298, %v311
      %v335 = vmul.f32 %v299, %v311
      %v336 = vmul.f32 %v300, %v311
      %v337 = vmul.f32 %v301, %v311
      %v338 = vmul.f32 %v302, %v311
      %v339 = vmul.f32 %v303, %v311
      %v340 = vmul.f32 %v304, %v311
      %v341 = vmul.f32 %v305, %v311
      %v342 = vmul.f32 %v306, %v311
      %v343 = vmul.f32 %v307, %v311
      %v344 = vmul.f32 %v308, %v311
      %v345 = vld [vmem:[%s2] sm:$0x1]
      %v347 = vperm.slane %v345, 0
      %v349 = vadd.f32 %v313, %v347
      %v350 = vadd.f32 %v314, %v347
      %v351 = vadd.f32 %v315, %v347
      %v352 = vadd.f32 %v316, %v347
      %v353 = vadd.f32 %v317, %v347
      %v354 = vadd.f32 %v318, %v347
      %v355 = vadd.f32 %v319, %v347
      %v356 = vadd.f32 %v320, %v347
      %v357 = vadd.f32 %v321, %v347
      %v358 = vadd.f32 %v322, %v347
      %v359 = vadd.f32 %v323, %v347
      %v360 = vadd.f32 %v324, %v347
      %v361 = vadd.f32 %v325, %v347
      %v362 = vadd.f32 %v326, %v347
      %v363 = vadd.f32 %v327, %v347
      %v364 = vadd.f32 %v328, %v347
      %v365 = vadd.f32 %v329, %v347
      %v366 = vadd.f32 %v330, %v347
      %v367 = vadd.f32 %v331, %v347
      %v368 = vadd.f32 %v332, %v347
      %v369 = vadd.f32 %v333, %v347
      %v370 = vadd.f32 %v334, %v347
      %v371 = vadd.f32 %v335, %v347
      %v372 = vadd.f32 %v336, %v347
      %v373 = vadd.f32 %v337, %v347
      %v374 = vadd.f32 %v338, %v347
      %v375 = vadd.f32 %v339, %v347
      %v376 = vadd.f32 %v340, %v347
      %v377 = vadd.f32 %v341, %v347
      %v378 = vadd.f32 %v342, %v347
      %v379 = vadd.f32 %v343, %v347
      %v380 = vadd.f32 %v344, %v347
      %v381 = vld [vmem:[%s269] sm:$0xff]
      %v382 = vld [vmem:[%s269 + $0x8] sm:$0xff]
      %v383 = vld [vmem:[%s269 + $0x10] sm:$0xff]
      %v384 = vld [vmem:[%s269 + $0x18] sm:$0xff]
      %v385 = vld [vmem:[%s269 + $0x20] sm:$0xff]
      %v386 = vld [vmem:[%s269 + $0x28] sm:$0xff]
      %v387 = vld [vmem:[%s269 + $0x30] sm:$0xff]
      %v388 = vld [vmem:[%s269 + $0x38] sm:$0xff]
      %v389 = vld [vmem:[%s269 + $0x40] sm:$0xff]
      %v390 = vld [vmem:[%s269 + $0x48] sm:$0xff]
      %v391 = vld [vmem:[%s269 + $0x50] sm:$0xff]
      %v392 = vld [vmem:[%s269 + $0x58] sm:$0xff]
      %v393 = vld [vmem:[%s269 + $0x60] sm:$0xff]
      %v394 = vld [vmem:[%s269 + $0x68] sm:$0xff]
      %v395 = vld [vmem:[%s269 + $0x70] sm:$0xff]
      %v396 = vld [vmem:[%s269 + $0x78] sm:$0xff]
      %v397 = vld [vmem:[%s269 + $0x80] sm:$0xff]
      %v398 = vld [vmem:[%s269 + $0x88] sm:$0xff]
      %v399 = vld [vmem:[%s269 + $0x90] sm:$0xff]
      %v400 = vld [vmem:[%s269 + $0x98] sm:$0xff]
      %v401 = vld [vmem:[%s269 + $0xa0] sm:$0xff]
      %v402 = vld [vmem:[%s269 + $0xa8] sm:$0xff]
      %v403 = vld [vmem:[%s269 + $0xb0] sm:$0xff]
      %v404 = vld [vmem:[%s269 + $0xb8] sm:$0xff]
      %v405 = vld [vmem:[%s269 + $0xc0] sm:$0xff]
      %v406 = vld [vmem:[%s269 + $0xc8] sm:$0xff]
      %v407 = vld [vmem:[%s269 + $0xd0] sm:$0xff]
      %v408 = vld [vmem:[%s269 + $0xd8] sm:$0xff]
      %v409 = vld [vmem:[%s269 + $0xe0] sm:$0xff]
      %v410 = vld [vmem:[%s269 + $0xe8] sm:$0xff]
      %v411 = vld [vmem:[%s269 + $0xf0] sm:$0xff]
      %v412 = vld [vmem:[%s269 + $0xf8] sm:$0xff]
      %v413 = vld [vmem:[%s4] sm:$0x1]
      %v415 = vperm.slane %v413, 0
      %v417 = vmul.f32 %v381, %v415
      %v418 = vmul.f32 %v382, %v415
      %v419 = vmul.f32 %v383, %v415
      %v420 = vmul.f32 %v384, %v415
      %v421 = vmul.f32 %v385, %v415
      %v422 = vmul.f32 %v386, %v415
      %v423 = vmul.f32 %v387, %v415
      %v424 = vmul.f32 %v388, %v415
      %v425 = vmul.f32 %v389, %v415
      %v426 = vmul.f32 %v390, %v415
      %v427 = vmul.f32 %v391, %v415
      %v428 = vmul.f32 %v392, %v415
      %v429 = vmul.f32 %v393, %v415
      %v430 = vmul.f32 %v394, %v415
      %v431 = vmul.f32 %v395, %v415
      %v432 = vmul.f32 %v396, %v415
      %v433 = vmul.f32 %v397, %v415
      %v434 = vmul.f32 %v398, %v415
      %v435 = vmul.f32 %v399, %v415
      %v436 = vmul.f32 %v400, %v415
      %v437 = vmul.f32 %v401, %v415
      %v438 = vmul.f32 %v402, %v415
      %v439 = vmul.f32 %v403, %v415
      %v440 = vmul.f32 %v404, %v415
      %v441 = vmul.f32 %v405, %v415
      %v442 = vmul.f32 %v406, %v415
      %v443 = vmul.f32 %v407, %v415
      %v444 = vmul.f32 %v408, %v415
      %v445 = vmul.f32 %v409, %v415
      %v446 = vmul.f32 %v410, %v415
      %v447 = vmul.f32 %v411, %v415
      %v448 = vmul.f32 %v412, %v415
      %v449 = vld [vmem:[%s5] sm:$0x1]
      %v451 = vperm.slane %v449, 0
      %v453 = vadd.f32 %v417, %v451
      %v454 = vadd.f32 %v418, %v451
      %v455 = vadd.f32 %v419, %v451
      %v456 = vadd.f32 %v420, %v451
      %v457 = vadd.f32 %v421, %v451
      %v458 = vadd.f32 %v422, %v451
      %v459 = vadd.f32 %v423, %v451
      %v460 = vadd.f32 %v424, %v451
      %v461 = vadd.f32 %v425, %v451
      %v462 = vadd.f32 %v426, %v451
      %v463 = vadd.f32 %v427, %v451
      %v464 = vadd.f32 %v428, %v451
      %v465 = vadd.f32 %v429, %v451
      %v466 = vadd.f32 %v430, %v451
      %v467 = vadd.f32 %v431, %v451
      %v468 = vadd.f32 %v432, %v451
      %v469 = vadd.f32 %v433, %v451
      %v470 = vadd.f32 %v434, %v451
      %v471 = vadd.f32 %v435, %v451
      %v472 = vadd.f32 %v436, %v451
      %v473 = vadd.f32 %v437, %v451
      %v474 = vadd.f32 %v438, %v451
      %v475 = vadd.f32 %v439, %v451
      %v476 = vadd.f32 %v440, %v451
      %v477 = vadd.f32 %v441, %v451
      %v478 = vadd.f32 %v442, %v451
      %v479 = vadd.f32 %v443, %v451
      %v480 = vadd.f32 %v444, %v451
      %v481 = vadd.f32 %v445, %v451
      %v482 = vadd.f32 %v446, %v451
      %v483 = vadd.f32 %v447, %v451
      %v484 = vadd.f32 %v448, %v451
      %v485 = vadd.f32 %v349, %v453
      %v486 = vadd.f32 %v350, %v454
      %v487 = vadd.f32 %v351, %v455
      %v488 = vadd.f32 %v352, %v456
      %v489 = vadd.f32 %v353, %v457
      %v490 = vadd.f32 %v354, %v458
      %v491 = vadd.f32 %v355, %v459
      %v492 = vadd.f32 %v356, %v460
      %v493 = vadd.f32 %v357, %v461
      %v494 = vadd.f32 %v358, %v462
      %v495 = vadd.f32 %v359, %v463
      %v496 = vadd.f32 %v360, %v464
      %v497 = vadd.f32 %v361, %v465
      %v498 = vadd.f32 %v362, %v466
      %v499 = vadd.f32 %v363, %v467
      %v500 = vadd.f32 %v364, %v468
      %v501 = vadd.f32 %v365, %v469
      %v502 = vadd.f32 %v366, %v470
      %v503 = vadd.f32 %v367, %v471
      %v504 = vadd.f32 %v368, %v472
      %v505 = vadd.f32 %v369, %v473
      %v506 = vadd.f32 %v370, %v474
      %v507 = vadd.f32 %v371, %v475
      %v508 = vadd.f32 %v372, %v476
      %v509 = vadd.f32 %v373, %v477
      %v510 = vadd.f32 %v374, %v478
      %v511 = vadd.f32 %v375, %v479
      %v512 = vadd.f32 %v376, %v480
      %v513 = vadd.f32 %v377, %v481
      %v514 = vadd.f32 %v378, %v482
      %v515 = vadd.f32 %v379, %v483
      %v516 = vadd.f32 %v380, %v484
      %v517 = vmax.f32 %v485, 0.0
      %v518 = vmax.f32 %v486, 0.0
      %v519 = vmax.f32 %v487, 0.0
      %v520 = vmax.f32 %v488, 0.0
      %v521 = vmax.f32 %v489, 0.0
      %v522 = vmax.f32 %v490, 0.0
      %v523 = vmax.f32 %v491, 0.0
      %v524 = vmax.f32 %v492, 0.0
      %v525 = vmax.f32 %v493, 0.0
      %v526 = vmax.f32 %v494, 0.0
      %v527 = vmax.f32 %v495, 0.0
      %v528 = vmax.f32 %v496, 0.0
      %v529 = vmax.f32 %v497, 0.0
      %v530 = vmax.f32 %v498, 0.0
      %v531 = vmax.f32 %v499, 0.0
      %v532 = vmax.f32 %v500, 0.0
      %v533 = vmax.f32 %v501, 0.0
      %v534 = vmax.f32 %v502, 0.0
      %v535 = vmax.f32 %v503, 0.0
      %v536 = vmax.f32 %v504, 0.0
      %v537 = vmax.f32 %v505, 0.0
      %v538 = vmax.f32 %v506, 0.0
      %v539 = vmax.f32 %v507, 0.0
      %v540 = vmax.f32 %v508, 0.0
      %v541 = vmax.f32 %v509, 0.0
      %v542 = vmax.f32 %v510, 0.0
      %v543 = vmax.f32 %v511, 0.0
      %v544 = vmax.f32 %v512, 0.0
      %v545 = vmax.f32 %v513, 0.0
      %v546 = vmax.f32 %v514, 0.0
      %v547 = vmax.f32 %v515, 0.0
      %v548 = vmax.f32 %v516, 0.0
      %549 = vst [vmem:[%s275] sm:$0xff] %v517
      %550 = vst [vmem:[%s275 + $0x8] sm:$0xff] %v518
      %551 = vst [vmem:[%s275 + $0x10] sm:$0xff] %v519
      %552 = vst [vmem:[%s275 + $0x18] sm:$0xff] %v520
      %553 = vst [vmem:[%s275 + $0x20] sm:$0xff] %v521
      %554 = vst [vmem:[%s275 + $0x28] sm:$0xff] %v522
      %555 = vst [vmem:[%s275 + $0x30] sm:$0xff] %v523
      %556 = vst [vmem:[%s275 + $0x38] sm:$0xff] %v524
      %557 = vst [vmem:[%s275 + $0x40] sm:$0xff] %v525
      %558 = vst [vmem:[%s275 + $0x48] sm:$0xff] %v526
      %559 = vst [vmem:[%s275 + $0x50] sm:$0xff] %v527
      %560 = vst [vmem:[%s275 + $0x58] sm:$0xff] %v528
      %561 = vst [vmem:[%s275 + $0x60] sm:$0xff] %v529
      %562 = vst [vmem:[%s275 + $0x68] sm:$0xff] %v530
      %563 = vst [vmem:[%s275 + $0x70] sm:$0xff] %v531
      %564 = vst [vmem:[%s275 + $0x78] sm:$0xff] %v532
      %565 = vst [vmem:[%s275 + $0x80] sm:$0xff] %v533
      %566 = vst [vmem:[%s275 + $0x88] sm:$0xff] %v534
      %567 = vst [vmem:[%s275 + $0x90] sm:$0xff] %v535
      %568 = vst [vmem:[%s275 + $0x98] sm:$0xff] %v536
      %569 = vst [vmem:[%s275 + $0xa0] sm:$0xff] %v537
      %570 = vst [vmem:[%s275 + $0xa8] sm:$0xff] %v538
      %571 = vst [vmem:[%s275 + $0xb0] sm:$0xff] %v539
      %572 = vst [vmem:[%s275 + $0xb8] sm:$0xff] %v540
      %573 = vst [vmem:[%s275 + $0xc0] sm:$0xff] %v541
      %574 = vst [vmem:[%s275 + $0xc8] sm:$0xff] %v542
      %575 = vst [vmem:[%s275 + $0xd0] sm:$0xff] %v543
      %576 = vst [vmem:[%s275 + $0xd8] sm:$0xff] %v544
      %577 = vst [vmem:[%s275 + $0xe0] sm:$0xff] %v545
      %578 = vst [vmem:[%s275 + $0xe8] sm:$0xff] %v546
      %579 = vst [vmem:[%s275 + $0xf0] sm:$0xff] %v547
      %580 = vst [vmem:[%s275 + $0xf8] sm:$0xff] %v548
      %s581 = smul.u32 32, %s17
      %p582 = scmp.lt.s32.totalorder %s581, 63
      %s583 = scalar_select %p582, %s581, 63
      %s584 = smul.addr %s583, 8
      %s585 = scalar_lea.vmem %s6, %s584
      // Predicated region
      $region45: #{residual_block_forward.9} parent=43 // pred_check
        %p586 = pneg %p171
      $region46: #{residual_block_forward.9} parent=43 // pred_check_branch
        %588 = sbr.rel (%p586) target = $region48
      $region47: #{residual_block_forward.9} parent=43 // pred_region
        %s589 = smul.u32 32, %s17
      $region48: #{residual_block_forward.9} parent=43 // pred_fallthru
        _
    $region44: #{residual_block_forward.9} parent=5 // pred_fallthru
      _
    %p590 = scmp.le.s32.totalorder 2, %s12
    // Predicated region
    $region49: #{residual_block_forward.9} parent=5 // pred_check
      %p591 = pneg %p590
    $region50: #{residual_block_forward.9} parent=5 // pred_check_branch
      %593 = sbr.rel (%p591) target = $region52
    $region51: #{residual_block_forward.9} parent=5 // pred_region
      %s594 = ssub.s32 %s12, 2
      // Predicated region
      $region53: #{residual_block_forward.9} parent=51 // pred_check
        %p595 = pneg %p177
      $region54: #{residual_block_forward.9} parent=51 // pred_check_branch
        %597 = sbr.rel (%p595) target = $region56
      $region55: #{residual_block_forward.9} parent=51 // pred_region
        %s598 = smul.u32 32, %s18
        %p599 = scmp.lt.s32.totalorder %s598, 63
        %s600 = scalar_select %p599, %s598, 63
        %s601 = smul.addr %s600, 8
        %s602 = scalar_lea.vmem %s6, %s601
      $region56: #{residual_block_forward.9} parent=51 // pred_fallthru
        _
    $region52: #{residual_block_forward.9} parent=5 // pred_fallthru
      _
  $region6: #{residual_block_forward.9} parent=0 // loop_footer
    %s16 = sadd.s32 1, %s12
  $region7: #{residual_block_forward.9} parent=0 // loop_footer_branch
    %11 = sbr.rel target = $region3
  $region8: #{residual_block_forward.9} parent=0 // loop_exit
    _

</llo_original>
